<compile_context>
chip_gen: v6e
topology: v6e:2x2x1
jax: 0.10.0
libtpu: 0.0.40
codegen_flags: <defaults>
</compile_context>

<pallas_src>
import jax
import jax.numpy as jnp
from jax.experimental import pallas as pl
from jax.experimental.pallas import tpu as pltpu


# ----------------------------------------------------------------------------
# Fused Pallas kernel: adapt5/adapt4/adapt3 + decoder fuse conv + 1-ch out conv
# ----------------------------------------------------------------------------
def _mask_head_kernel(x_ref, f4_ref, f3_ref,
                      w5_ref, s5_ref, w4_ref, s4_ref, w3_ref, s3_ref,
                      wf5_ref, wf4_ref, wf3_ref, sf_ref,
                      wo_ref, bo_ref, o_ref):
    f32 = jnp.float32
    # 1x1 adapt convs == matmuls; BN scale pre-folded into weights, shift added
    # here (BasicConv2d applies no ReLU in forward).
    x5 = jnp.dot(x_ref[...], w5_ref[...], preferred_element_type=f32) + s5_ref[...]
    x4 = jnp.dot(f4_ref[...], w4_ref[...], preferred_element_type=f32) + s4_ref[...]
    x3 = jnp.dot(f3_ref[...], w3_ref[...], preferred_element_type=f32) + s3_ref[...]
    # Decoder fuse conv on concat([x5, x4, x3], axis=C) == sum of 3 matmuls
    # against the corresponding 64-row slices of the fuse weight (no concat,
    # no HBM round trip).
    fused = (jnp.dot(x5, wf5_ref[...], preferred_element_type=f32)
             + jnp.dot(x4, wf4_ref[...], preferred_element_type=f32)
             + jnp.dot(x3, wf3_ref[...], preferred_element_type=f32)
             + sf_ref[...])
    fused = jnp.maximum(fused, 0.0)                      # fuse-conv ReLU
    # Cout=1 output conv on the VPU/XLU (mul + lane reduce): avoids a 1-column
    # MXU matmul and a separate pallas_call with a (tm, 1) output block.
    out = jnp.sum(fused * wo_ref[...], axis=-1, keepdims=True) + bo_ref[...]
    o_ref[...] = out.astype(o_ref.dtype)


def _bcast_batch_map(rep):
    # PyTorch `_expand(t, rep)` repeat expressed in the index_map: grid batch b
    # reads source batch b // rep. No duplicated HBM copy is materialized.
    if rep == 1:
        return lambda b, s: (b, s, 0)
    return lambda b, s: (b // rep, s, 0)


def _nchw_to_nsc(t, dtype):
    n, c, h, w = t.shape
    return jnp.transpose(t.astype(dtype), (0, 2, 3, 1)).reshape(n, h * w, c)


# ----------------------------------------------------------------------------
# Host-side parameter folding (done once, outside the hot path)
# ----------------------------------------------------------------------------
def prepare_kernel_params(params, *, compute_dtype=jnp.bfloat16):
    ch = params["dec"]["fuse"]["w"].shape[1]

    def fold(p, dtype):
        # Fold BN scale into the conv weight; keep the shift in f32.
        return (p["w"] * p["scale"]).astype(dtype), p["shift"].astype(jnp.float32)

    w5, s5 = fold(params["adapt5"], compute_dtype)
    w4, s4 = fold(params["adapt4"], compute_dtype)
    w3, s3 = fold(params["adapt3"], compute_dtype)
    # Fuse conv runs on f32 intermediates; its weights are tiny -> keep f32.
    wf, sf = fold(params["dec"]["fuse"], jnp.float32)
    dec = params["dec"]
    wo = (dec["out_w"].reshape(1, ch) * dec["out_scale"]).astype(jnp.float32)
    bo = dec["out_bias"].astype(jnp.float32)
    return dict(w5=w5, s5=s5, w4=w4, s4=s4, w3=w3, s3=s3,
                wf5=wf[:ch], wf4=wf[ch:2 * ch], wf3=wf[2 * ch:], sf=sf,
                wo=wo, bo=bo)


# ----------------------------------------------------------------------------
# MaskHead forward
# ----------------------------------------------------------------------------
def mask_head_forward(params, x, fpns, *, spatial_tile=1024,
                      compute_dtype=jnp.bfloat16):
    kp = prepare_kernel_params(params, compute_dtype=compute_dtype)

    N, _, H, W = x.shape
    f0, f1 = fpns[0], fpns[1]                 # adapt4 input, adapt3 input
    rep4 = N // f0.shape[0]
    rep3 = N // f1.shape[0]
    S = H * W

    # One transpose per input at the module boundary; everything downstream is
    # (batch, H*W, C).
    xf = _nchw_to_nsc(x, compute_dtype)
    f4f = _nchw_to_nsc(f0, compute_dtype)
    f3f = _nchw_to_nsc(f1, compute_dtype)

    # Big, lane/sublane-aligned spatial tile; clamp to the full spatial extent
    # for small inputs (full-dim blocks are always legal).
    ts = S if S <= spatial_tile else spatial_tile

    const = lambda b, s: (0, 0)
    # Weight blocks are small (~0.5 MiB total even double-buffered), so we skip
    # pipeline_mode=pl.Buffered(1); activation tiles dominate VMEM anyway.
    in_specs = [
        pl.BlockSpec((None, ts, xf.shape[2]), lambda b, s: (b, s, 0)),
        pl.BlockSpec((None, ts, f4f.shape[2]), _bcast_batch_map(rep4)),
        pl.BlockSpec((None, ts, f3f.shape[2]), _bcast_batch_map(rep3)),
        pl.BlockSpec(kp["w5"].shape, const),
        pl.BlockSpec(kp["s5"].shape, const),
        pl.BlockSpec(kp["w4"].shape, const),
        pl.BlockSpec(kp["s4"].shape, const),
        pl.BlockSpec(kp["w3"].shape, const),
        pl.BlockSpec(kp["s3"].shape, const),
        pl.BlockSpec(kp["wf5"].shape, const),
        pl.BlockSpec(kp["wf4"].shape, const),
        pl.BlockSpec(kp["wf3"].shape, const),
        pl.BlockSpec(kp["sf"].shape, const),
        pl.BlockSpec(kp["wo"].shape, const),
        pl.BlockSpec(kp["bo"].shape, const),
    ]

    out_flat = pl.pallas_call(
        _mask_head_kernel,
        out_shape=jax.ShapeDtypeStruct((N, S, 1), jnp.float32),
        grid_spec=pltpu.PrefetchScalarGridSpec(
            num_scalar_prefetch=0,
            grid=(N, pl.cdiv(S, ts)),
            in_specs=in_specs,
            out_specs=pl.BlockSpec((None, ts, 1), lambda b, s: (b, s, 0)),
        ),
        compiler_params=pltpu.CompilerParams(
            dimension_semantics=("parallel", "parallel"),
            vmem_limit_bytes=48 * 1024 * 1024,   # safe on v5e/v6e (128 MiB) and v7x (64 MiB)
        ),
    )(xf, f4f, f3f,
      kp["w5"], kp["s5"], kp["w4"], kp["s4"], kp["w3"], kp["s3"],
      kp["wf5"], kp["wf4"], kp["wf3"], kp["sf"], kp["wo"], kp["bo"])

    # (N, S, 1) -> (N, 1, H, W); channel dim is 1 so this is effectively a reshape.
    return jnp.transpose(out_flat.reshape(N, H, W, 1), (0, 3, 1, 2))


# ----------------------------------------------------------------------------
# Deterministic parameter initialization (shapes follow MaskHead.__init__)
# ----------------------------------------------------------------------------
def make_basic_conv2d_params(key, cin, cout, eps=1e-5):
    kw, kg, kb, km, kv = jax.random.split(key, 5)
    # torch conv weight (cout, cin, 1, 1) -> stored transposed as (cin, cout)
    w = (jax.random.normal(kw, (cout, cin), jnp.float32) * 0.02).T
    gamma = 1.0 + 0.1 * jax.random.normal(kg, (cout,), jnp.float32)
    beta = 0.1 * jax.random.normal(kb, (cout,), jnp.float32)
    mean = 0.1 * jax.random.normal(km, (cout,), jnp.float32)
    var = jnp.abs(jax.random.normal(kv, (cout,), jnp.float32)) + 1.0
    scale = gamma / jnp.sqrt(var + eps)
    shift = beta - mean * scale
    return {
        "w": w,
        "scale": scale.reshape(1, cout),
        "shift": shift.reshape(1, cout),
    }


def make_mask_head_params(key, channel=64):
    keys = jax.random.split(key, 6)
    params = {
        # adapt2 is defined in __init__ but unused by forward; kept for fidelity.
        "adapt2": make_basic_conv2d_params(keys[0], 256, channel * 4),
        "adapt3": make_basic_conv2d_params(keys[1], 512, channel),
        "adapt4": make_basic_conv2d_params(keys[2], 1024, channel),
        "adapt5": make_basic_conv2d_params(keys[3], channel * 2, channel),
    }
    kdec_fuse, kdec_out = jax.random.split(keys[4], 2)
    out_w = (jax.random.normal(kdec_out, (1, channel), jnp.float32) * 0.02).T
    params["dec"] = {
        "fuse": make_basic_conv2d_params(kdec_fuse, channel * 3, channel),
        "out_w": out_w,                                  # (channel, 1)
        "out_scale": jnp.ones((1, 1), jnp.float32),
        "out_bias": 0.1 * jax.random.normal(keys[5], (1, 1), jnp.float32),
    }
    return params


# ----------------------------------------------------------------------------
if __name__ == "__main__":
    channel = 64
    N, H, W = 2, 8, 8

    key = jax.random.PRNGKey(0)
    kp, kx, kf0, kf1 = jax.random.split(key, 4)

    params = make_mask_head_params(kp, channel=channel)

    # NCHW inputs, consistent with the PyTorch module's channel counts.
    x = jax.random.normal(kx, (N, channel * 2, H, W), jnp.float32)     # adapt5 in
    fpn0 = jax.random.normal(kf0, (N, 1024, H, W), jnp.float32)        # adapt4 in
    fpn1 = jax.random.normal(kf1, (N, 512, H, W), jnp.float32)         # adapt3 in

    fwd = jax.jit(mask_head_forward)
    out = fwd(params, x, [fpn0, fpn1])
    out = jax.block_until_ready(out)

    assert out.shape == (N, 1, H, W), out.shape
    assert out.dtype == jnp.float32
    print("KERNEL_OK")
</pallas_src>

<mosaic_0001>
module attributes {stable_mosaic.version = 11 : i64} {
  func.func @_mask_head_kernel(%arg0: i32, %arg1: i32, %arg2: memref<1x64x128xbf16, #tpu.memory_space<vmem>>, %arg3: memref<1x64x1024xbf16, #tpu.memory_space<vmem>>, %arg4: memref<1x64x512xbf16, #tpu.memory_space<vmem>>, %arg5: memref<128x64xbf16, #tpu.memory_space<vmem>>, %arg6: memref<1x64xf32, #tpu.memory_space<vmem>>, %arg7: memref<1024x64xbf16, #tpu.memory_space<vmem>>, %arg8: memref<1x64xf32, #tpu.memory_space<vmem>>, %arg9: memref<512x64xbf16, #tpu.memory_space<vmem>>, %arg10: memref<1x64xf32, #tpu.memory_space<vmem>>, %arg11: memref<64x64xf32, #tpu.memory_space<vmem>>, %arg12: memref<64x64xf32, #tpu.memory_space<vmem>>, %arg13: memref<64x64xf32, #tpu.memory_space<vmem>>, %arg14: memref<1x64xf32, #tpu.memory_space<vmem>>, %arg15: memref<1x64xf32, #tpu.memory_space<vmem>>, %arg16: memref<1x1xf32, #tpu.memory_space<vmem>>, %arg17: memref<1x64x1xf32, #tpu.memory_space<vmem>>) attributes {dimension_semantics = [#tpu.dimension_semantics<parallel>, #tpu.dimension_semantics<parallel>], iteration_bounds = array<i64: 2, 1>, scalar_prefetch = 0 : i64, scratch_operands = 0 : i64, tpu.core_type = #tpu.core_type<tc>, window_params = [{transform_indices = @transform_0, window_bounds = array<i64: 1, 64, 128>}, {transform_indices = @transform_1, window_bounds = array<i64: 1, 64, 1024>}, {transform_indices = @transform_2, window_bounds = array<i64: 1, 64, 512>}, {pipeline_mode = #tpu.pipeline_mode<synchronous>, transform_indices = @transform_3, window_bounds = array<i64: 128, 64>}, {pipeline_mode = #tpu.pipeline_mode<synchronous>, transform_indices = @transform_4, window_bounds = array<i64: 1, 64>}, {pipeline_mode = #tpu.pipeline_mode<synchronous>, transform_indices = @transform_5, window_bounds = array<i64: 1024, 64>}, {pipeline_mode = #tpu.pipeline_mode<synchronous>, transform_indices = @transform_6, window_bounds = array<i64: 1, 64>}, {pipeline_mode = #tpu.pipeline_mode<synchronous>, transform_indices = @transform_7, window_bounds = array<i64: 512, 64>}, {pipeline_mode = #tpu.pipeline_mode<synchronous>, transform_indices = @transform_8, window_bounds = array<i64: 1, 64>}, {pipeline_mode = #tpu.pipeline_mode<synchronous>, transform_indices = @transform_9, window_bounds = array<i64: 64, 64>}, {pipeline_mode = #tpu.pipeline_mode<synchronous>, transform_indices = @transform_10, window_bounds = array<i64: 64, 64>}, {pipeline_mode = #tpu.pipeline_mode<synchronous>, transform_indices = @transform_11, window_bounds = array<i64: 64, 64>}, {pipeline_mode = #tpu.pipeline_mode<synchronous>, transform_indices = @transform_12, window_bounds = array<i64: 1, 64>}, {pipeline_mode = #tpu.pipeline_mode<synchronous>, transform_indices = @transform_13, window_bounds = array<i64: 1, 64>}, {pipeline_mode = #tpu.pipeline_mode<synchronous>, transform_indices = @transform_14, window_bounds = array<i64: 1, 1>}, {transform_indices = @transform_15, window_bounds = array<i64: 1, 64, 1>}]} {
    %c0 = arith.constant 0 : index
    %c0_0 = arith.constant 0 : index
    %c0_1 = arith.constant 0 : index
    %0 = vector.load %arg2[%c0, %c0_0, %c0_1] : memref<1x64x128xbf16, #tpu.memory_space<vmem>>, vector<1x64x128xbf16>
    %1 = vector.shape_cast %0 : vector<1x64x128xbf16> to vector<64x128xbf16>
    %c0_2 = arith.constant 0 : index
    %c0_3 = arith.constant 0 : index
    %2 = vector.load %arg5[%c0_2, %c0_3] : memref<128x64xbf16, #tpu.memory_space<vmem>>, vector<128x64xbf16>
    %cst = arith.constant dense<0.000000e+00> : vector<64x64xf32>
    %3 = tpu.matmul %1, %2, %cst {dimension_numbers = #tpu.dot_dimension_numbers<[1], [0], [0], [1], [0, 0, 1, 1], [], []>} : vector<64x128xbf16>, vector<128x64xbf16>, vector<64x64xf32> -> vector<64x64xf32>
    %c0_4 = arith.constant 0 : index
    %c0_5 = arith.constant 0 : index
    %4 = vector.load %arg6[%c0_4, %c0_5] : memref<1x64xf32, #tpu.memory_space<vmem>>, vector<1x64xf32>
    %5 = vector.broadcast %4 : vector<1x64xf32> to vector<64x64xf32>
    %6 = arith.addf %3, %5 : vector<64x64xf32>
    %c0_6 = arith.constant 0 : index
    %c0_7 = arith.constant 0 : index
    %c0_8 = arith.constant 0 : index
    %7 = vector.load %arg3[%c0_6, %c0_7, %c0_8] : memref<1x64x1024xbf16, #tpu.memory_space<vmem>>, vector<1x64x1024xbf16>
    %8 = vector.shape_cast %7 : vector<1x64x1024xbf16> to vector<64x1024xbf16>
    %c0_9 = arith.constant 0 : index
    %c0_10 = arith.constant 0 : index
    %9 = vector.load %arg7[%c0_9, %c0_10] : memref<1024x64xbf16, #tpu.memory_space<vmem>>, vector<1024x64xbf16>
    %cst_11 = arith.constant dense<0.000000e+00> : vector<64x64xf32>
    %10 = tpu.matmul %8, %9, %cst_11 {dimension_numbers = #tpu.dot_dimension_numbers<[1], [0], [0], [1], [0, 0, 1, 1], [], []>} : vector<64x1024xbf16>, vector<1024x64xbf16>, vector<64x64xf32> -> vector<64x64xf32>
    %c0_12 = arith.constant 0 : index
    %c0_13 = arith.constant 0 : index
    %11 = vector.load %arg8[%c0_12, %c0_13] : memref<1x64xf32, #tpu.memory_space<vmem>>, vector<1x64xf32>
    %12 = vector.broadcast %11 : vector<1x64xf32> to vector<64x64xf32>
    %13 = arith.addf %10, %12 : vector<64x64xf32>
    %c0_14 = arith.constant 0 : index
    %c0_15 = arith.constant 0 : index
    %c0_16 = arith.constant 0 : index
    %14 = vector.load %arg4[%c0_14, %c0_15, %c0_16] : memref<1x64x512xbf16, #tpu.memory_space<vmem>>, vector<1x64x512xbf16>
    %15 = vector.shape_cast %14 : vector<1x64x512xbf16> to vector<64x512xbf16>
    %c0_17 = arith.constant 0 : index
    %c0_18 = arith.constant 0 : index
    %16 = vector.load %arg9[%c0_17, %c0_18] : memref<512x64xbf16, #tpu.memory_space<vmem>>, vector<512x64xbf16>
    %cst_19 = arith.constant dense<0.000000e+00> : vector<64x64xf32>
    %17 = tpu.matmul %15, %16, %cst_19 {dimension_numbers = #tpu.dot_dimension_numbers<[1], [0], [0], [1], [0, 0, 1, 1], [], []>} : vector<64x512xbf16>, vector<512x64xbf16>, vector<64x64xf32> -> vector<64x64xf32>
    %c0_20 = arith.constant 0 : index
    %c0_21 = arith.constant 0 : index
    %18 = vector.load %arg10[%c0_20, %c0_21] : memref<1x64xf32, #tpu.memory_space<vmem>>, vector<1x64xf32>
    %19 = vector.broadcast %18 : vector<1x64xf32> to vector<64x64xf32>
    %20 = arith.addf %17, %19 : vector<64x64xf32>
    %c0_22 = arith.constant 0 : index
    %c0_23 = arith.constant 0 : index
    %21 = vector.load %arg11[%c0_22, %c0_23] : memref<64x64xf32, #tpu.memory_space<vmem>>, vector<64x64xf32>
    %cst_24 = arith.constant dense<0.000000e+00> : vector<64x64xf32>
    %22 = tpu.matmul %6, %21, %cst_24 {dimension_numbers = #tpu.dot_dimension_numbers<[1], [0], [0], [1], [0, 0, 1, 1], [], []>} : vector<64x64xf32>, vector<64x64xf32>, vector<64x64xf32> -> vector<64x64xf32>
    %c0_25 = arith.constant 0 : index
    %c0_26 = arith.constant 0 : index
    %23 = vector.load %arg12[%c0_25, %c0_26] : memref<64x64xf32, #tpu.memory_space<vmem>>, vector<64x64xf32>
    %cst_27 = arith.constant dense<0.000000e+00> : vector<64x64xf32>
    %24 = tpu.matmul %13, %23, %cst_27 {dimension_numbers = #tpu.dot_dimension_numbers<[1], [0], [0], [1], [0, 0, 1, 1], [], []>} : vector<64x64xf32>, vector<64x64xf32>, vector<64x64xf32> -> vector<64x64xf32>
    %25 = arith.addf %22, %24 : vector<64x64xf32>
    %c0_28 = arith.constant 0 : index
    %c0_29 = arith.constant 0 : index
    %26 = vector.load %arg13[%c0_28, %c0_29] : memref<64x64xf32, #tpu.memory_space<vmem>>, vector<64x64xf32>
    %cst_30 = arith.constant dense<0.000000e+00> : vector<64x64xf32>
    %27 = tpu.matmul %20, %26, %cst_30 {dimension_numbers = #tpu.dot_dimension_numbers<[1], [0], [0], [1], [0, 0, 1, 1], [], []>} : vector<64x64xf32>, vector<64x64xf32>, vector<64x64xf32> -> vector<64x64xf32>
    %28 = arith.addf %25, %27 : vector<64x64xf32>
    %c0_31 = arith.constant 0 : index
    %c0_32 = arith.constant 0 : index
    %29 = vector.load %arg14[%c0_31, %c0_32] : memref<1x64xf32, #tpu.memory_space<vmem>>, vector<1x64xf32>
    %30 = vector.broadcast %29 : vector<1x64xf32> to vector<64x64xf32>
    %31 = arith.addf %28, %30 : vector<64x64xf32>
    %cst_33 = arith.constant 0.000000e+00 : f32
    %32 = vector.broadcast %cst_33 : f32 to vector<64x64xf32>
    %33 = arith.maximumf %31, %32 : vector<64x64xf32>
    %c0_34 = arith.constant 0 : index
    %c0_35 = arith.constant 0 : index
    %34 = vector.load %arg15[%c0_34, %c0_35] : memref<1x64xf32, #tpu.memory_space<vmem>>, vector<1x64xf32>
    %35 = vector.broadcast %34 : vector<1x64xf32> to vector<64x64xf32>
    %36 = arith.mulf %33, %35 : vector<64x64xf32>
    %cst_36 = arith.constant dense<0.000000e+00> : vector<64xf32>
    %37 = vector.multi_reduction <add>, %36, %cst_36 [1] : vector<64x64xf32> to vector<64xf32>
    %38 = vector.shape_cast %37 : vector<64xf32> to vector<64x1xf32>
    %c0_37 = arith.constant 0 : index
    %c0_38 = arith.constant 0 : index
    %39 = vector.load %arg16[%c0_37, %c0_38] : memref<1x1xf32, #tpu.memory_space<vmem>>, vector<1x1xf32>
    %40 = vector.broadcast %39 : vector<1x1xf32> to vector<64x1xf32>
    %41 = arith.addf %38, %40 : vector<64x1xf32>
    %c0_39 = arith.constant 0 : index
    %c0_40 = arith.constant 0 : index
    %c0_41 = arith.constant 0 : index
    %42 = vector.load %arg17[%c0_39, %c0_40, %c0_41] : memref<1x64x1xf32, #tpu.memory_space<vmem>>, vector<1x64x1xf32>
    %43 = vector.shape_cast %42 : vector<1x64x1xf32> to vector<64x1xf32>
    %44 = vector.shape_cast %41 : vector<64x1xf32> to vector<1x64x1xf32>
    tpu.vector_store %arg17[%c0_39, %c0_40, %c0_41], %44 {strides = array<i32>} : memref<1x64x1xf32, #tpu.memory_space<vmem>>, vector<1x64x1xf32>,
    return
  }
  func.func @transform_0(%arg0: i32, %arg1: i32) -> (i32, i32, i32) {
    %c0_i32 = arith.constant 0 : i32
    %c0_i32_0 = arith.constant 0 : i32
    return %arg0, %arg1, %c0_i32 : i32, i32, i32
  }
  func.func @transform_1(%arg0: i32, %arg1: i32) -> (i32, i32, i32) {
    %c0_i32 = arith.constant 0 : i32
    %c0_i32_0 = arith.constant 0 : i32
    return %arg0, %arg1, %c0_i32 : i32, i32, i32
  }
  func.func @transform_2(%arg0: i32, %arg1: i32) -> (i32, i32, i32) {
    %c0_i32 = arith.constant 0 : i32
    %c0_i32_0 = arith.constant 0 : i32
    return %arg0, %arg1, %c0_i32 : i32, i32, i32
  }
  func.func @transform_3(%arg0: i32, %arg1: i32) -> (i32, i32) {
    %c0_i32 = arith.constant 0 : i32
    %c0_i32_0 = arith.constant 0 : i32
    %c0_i32_1 = arith.constant 0 : i32
    return %c0_i32, %c0_i32_0 : i32, i32
  }
  func.func @transform_4(%arg0: i32, %arg1: i32) -> (i32, i32) {
    %c0_i32 = arith.constant 0 : i32
    %c0_i32_0 = arith.constant 0 : i32
    %c0_i32_1 = arith.constant 0 : i32
    return %c0_i32, %c0_i32_0 : i32, i32
  }
  func.func @transform_5(%arg0: i32, %arg1: i32) -> (i32, i32) {
    %c0_i32 = arith.constant 0 : i32
    %c0_i32_0 = arith.constant 0 : i32
    %c0_i32_1 = arith.constant 0 : i32
    return %c0_i32, %c0_i32_0 : i32, i32
  }
  func.func @transform_6(%arg0: i32, %arg1: i32) -> (i32, i32) {
    %c0_i32 = arith.constant 0 : i32
    %c0_i32_0 = arith.constant 0 : i32
    %c0_i32_1 = arith.constant 0 : i32
    return %c0_i32, %c0_i32_0 : i32, i32
  }
  func.func @transform_7(%arg0: i32, %arg1: i32) -> (i32, i32) {
    %c0_i32 = arith.constant 0 : i32
    %c0_i32_0 = arith.constant 0 : i32
    %c0_i32_1 = arith.constant 0 : i32
    return %c0_i32, %c0_i32_0 : i32, i32
  }
  func.func @transform_8(%arg0: i32, %arg1: i32) -> (i32, i32) {
    %c0_i32 = arith.constant 0 : i32
    %c0_i32_0 = arith.constant 0 : i32
    %c0_i32_1 = arith.constant 0 : i32
    return %c0_i32, %c0_i32_0 : i32, i32
  }
  func.func @transform_9(%arg0: i32, %arg1: i32) -> (i32, i32) {
    %c0_i32 = arith.constant 0 : i32
    %c0_i32_0 = arith.constant 0 : i32
    %c0_i32_1 = arith.constant 0 : i32
    return %c0_i32, %c0_i32_0 : i32, i32
  }
  func.func @transform_10(%arg0: i32, %arg1: i32) -> (i32, i32) {
    %c0_i32 = arith.constant 0 : i32
    %c0_i32_0 = arith.constant 0 : i32
    %c0_i32_1 = arith.constant 0 : i32
    return %c0_i32, %c0_i32_0 : i32, i32
  }
  func.func @transform_11(%arg0: i32, %arg1: i32) -> (i32, i32) {
    %c0_i32 = arith.constant 0 : i32
    %c0_i32_0 = arith.constant 0 : i32
    %c0_i32_1 = arith.constant 0 : i32
    return %c0_i32, %c0_i32_0 : i32, i32
  }
  func.func @transform_12(%arg0: i32, %arg1: i32) -> (i32, i32) {
    %c0_i32 = arith.constant 0 : i32
    %c0_i32_0 = arith.constant 0 : i32
    %c0_i32_1 = arith.constant 0 : i32
    return %c0_i32, %c0_i32_0 : i32, i32
  }
  func.func @transform_13(%arg0: i32, %arg1: i32) -> (i32, i32) {
    %c0_i32 = arith.constant 0 : i32
    %c0_i32_0 = arith.constant 0 : i32
    %c0_i32_1 = arith.constant 0 : i32
    return %c0_i32, %c0_i32_0 : i32, i32
  }
  func.func @transform_14(%arg0: i32, %arg1: i32) -> (i32, i32) {
    %c0_i32 = arith.constant 0 : i32
    %c0_i32_0 = arith.constant 0 : i32
    %c0_i32_1 = arith.constant 0 : i32
    return %c0_i32, %c0_i32_0 : i32, i32
  }
  func.func @transform_15(%arg0: i32, %arg1: i32) -> (i32, i32, i32) {
    %c0_i32 = arith.constant 0 : i32
    %c0_i32_0 = arith.constant 0 : i32
    return %arg0, %arg1, %c0_i32 : i32, i32, i32
  }
}

</mosaic_0001>

<llo_original>
// kernel: mask_head_forward.1
$region0: #{mask_head_forward.1}
  #allocation0 [shape = 'u32[]', space=smem, size = 0x4, offset = 0x4, fixed_abs, tag = 'smem constant byte address 0x4 - core index']
  #allocation1 [shape = 'u32[144,128]{1,0:T(1,128)}', space=vmem, size = 0x12000, scoped, tag = 'internal scratch']
  #allocation2 [shape = 'f32[1,1]{1,0:T(1,128)S(1)}', space=vmem, size = 0x200, scoped, tag = 'scoped memory for mask_head_forward.1']
  %s0 = inlined_call_operand.vmem [shape: bf16[2,64,128], index: 0, kind: input, shape index: {}]
  %s1 = inlined_call_operand.vmem [shape: bf16[2,64,1024], index: 1, kind: input, shape index: {}]
  %s2 = inlined_call_operand.vmem [shape: bf16[2,64,512], index: 2, kind: input, shape index: {}]
  %s3 = inlined_call_operand.vmem [shape: bf16[128,64], index: 3, kind: input, shape index: {}]
  %s4 = inlined_call_operand.vmem [shape: f32[1,64], index: 4, kind: input, shape index: {}]
  %s5 = inlined_call_operand.vmem [shape: bf16[1024,64], index: 5, kind: input, shape index: {}]
  %s6 = inlined_call_operand.vmem [shape: f32[1,64], index: 6, kind: input, shape index: {}]
  %s7 = inlined_call_operand.vmem [shape: bf16[512,64], index: 7, kind: input, shape index: {}]
  %s8 = inlined_call_operand.vmem [shape: f32[1,64], index: 8, kind: input, shape index: {}]
  %s9 = inlined_call_operand.vmem [shape: f32[64,64], index: 9, kind: input, shape index: {}]
  %s10 = inlined_call_operand.vmem [shape: f32[64,64], index: 10, kind: input, shape index: {}]
  %s11 = inlined_call_operand.vmem [shape: f32[64,64], index: 11, kind: input, shape index: {}]
  %s12 = inlined_call_operand.vmem [shape: f32[1,64], index: 12, kind: input, shape index: {}]
  %s13 = inlined_call_operand.vmem [shape: f32[1,64], index: 13, kind: input, shape index: {}]
  %s14 = inlined_call_operand.<no memory space> [shape: f32[1,1], index: 14, kind: input, shape index: {}]
  %s15 = inlined_call_operand.vmem [shape: f32[2,64,1], index: 15, kind: output, shape index: {}]
  %s16 = sld [smem:[#allocation0]]
  $region93: #{mask_head_forward.1} parent=0
    _
  %s18 = ssub.s32 1, %s16
  %s19 = scalar_select 0, %s18, %s16
  %v20 = vstv %s14
  %21 = vst [vmem:[#allocation2] sm:$0x1] %v20
  loop: start=0, step=1, limit=4
  $region2: #{mask_head_forward.1} parent=0 // loop_pre_header
    _
  $region3: #{mask_head_forward.1} parent=0 // loop_header
    %s23 = sphi 0, %s27
    %p24 = scmp.ge.s32.totalorder %s23, 4
    %s30 = sphi 0, %s42
    %s31 = sphi 0, %s38
    %s32 = sphi 0, %s30
    %s33 = sphi 0, %s31
    %s34 = sphi 0, %s32
    %s35 = sphi 0, %s33
    %s47 = sphi 0, %s49
    %s50 = sphi 0, %s47
    %s51 = sphi 0, %s50
    %s67 = sphi 0, %s51
    %s75 = sphi 0, %s77
    %s78 = sphi 0, %s75
    %s79 = sphi 0, %s78
    %s95 = sphi 0, %s79
    %s103 = sphi 0, %s105
    %s106 = sphi 0, %s103
    %s107 = sphi 0, %s106
    %s123 = sphi 0, %s107
    %s127 = sphi 0, %s127
    %s129 = sphi 0, %s127
    %s130 = sphi 0, %s129
    %s144 = sphi 0, %s130
    %s148 = sphi 0, %s148
    %s150 = sphi 0, %s148
    %s151 = sphi 0, %s150
    %s165 = sphi 0, %s151
    %s169 = sphi 0, %s169
    %s171 = sphi 0, %s169
    %s172 = sphi 0, %s171
    %s186 = sphi 0, %s172
    %s190 = sphi 0, %s190
    %s192 = sphi 0, %s190
    %s193 = sphi 0, %s192
    %s207 = sphi 0, %s193
    %s211 = sphi 0, %s211
    %s213 = sphi 0, %s211
    %s214 = sphi 0, %s213
    %s228 = sphi 0, %s214
    %s232 = sphi 0, %s232
    %s234 = sphi 0, %s232
    %s235 = sphi 0, %s234
    %s249 = sphi 0, %s235
    %s253 = sphi 0, %s253
    %s255 = sphi 0, %s253
    %s256 = sphi 0, %s255
    %s270 = sphi 0, %s256
    %s274 = sphi 0, %s274
    %s276 = sphi 0, %s274
    %s277 = sphi 0, %s276
    %s291 = sphi 0, %s277
    %s295 = sphi 0, %s295
    %s297 = sphi 0, %s295
    %s298 = sphi 0, %s297
    %s312 = sphi 0, %s298
    %s316 = sphi 0, %s316
    %s318 = sphi 0, %s316
    %s319 = sphi 0, %s318
    %s333 = sphi 0, %s319
    %s337 = sphi 0, %s337
    %s339 = sphi 0, %s337
    %s340 = sphi 0, %s339
    %s354 = sphi 0, %s340
    %s358 = sphi 0, %s358
    %s360 = sphi 0, %s358
    %s361 = sphi 0, %s360
    %s375 = sphi 0, %s361
    %s383 = sphi 0, %s385
    %s386 = sphi 0, %s383
    %s387 = sphi 0, %s386
    %s403 = sphi 0, %s387
  $region4: #{mask_head_forward.1} parent=0 // loop_header_branch
    %26 = sbr.rel (%p24) target = $region8
  $region5: #{mask_head_forward.1} parent=0 // loop_body
    %s28 = ssub.s32 %s23, 1
    %s29 = ssub.s32 %s23, 2
    %s36 = sadd.s32 1, %s31
    %p37 = scmp.ge.s32.totalorder %s36, 1
    %s38 = scalar_select %p37, 0, %s36
    %s39 = sadd.s32 1, %s30
    %s40 = scalar_select %p37, %s39, %s30
    %p41 = scmp.ge.s32.totalorder %s40, 2
    %s42 = scalar_select %p41, 0, %s40
    %s43 = ssub.s32 %s30, %s42
    %s44 = ssub.s32 %s31, %s38
    %s45 = sor.u32 %s43, %s44
    %p46 = scmp.eq.s32.totalorder %s45, 0
    %s48 = sadd.s32 %s47, 1
    %s49 = scalar_select %p46, %s47, %s48
    %p52 = pneg %p46
    %p53 = scmp.eq.s32.totalorder %s23, 1
    %p54 = por %p52, %p53
    %p55 = scmp.ne.s32.totalorder %s47, %s50
    %p56 = scmp.eq.s32.totalorder %s23, 0
    %p57 = por %p55, %p56
    %p58 = scmp.ne.s32.totalorder %s47, %s50
    %p59 = scmp.eq.s32.totalorder %s28, 1
    %p60 = por %p58, %p59
    %p61 = scmp.ne.s32.totalorder %s50, %s51
    %p62 = scmp.eq.s32.totalorder %s28, 0
    %p63 = por %p61, %p62
    %p64 = scmp.ne.s32.totalorder %s50, %s51
    %p65 = scmp.eq.s32.totalorder %s29, 1
    %p66 = por %p64, %p65
    %p68 = scmp.ne.s32.totalorder %s51, %s67
    %p69 = scmp.eq.s32.totalorder %s29, 0
    %p70 = por %p68, %p69
    %s71 = ssub.s32 %s30, %s42
    %s72 = ssub.s32 %s31, %s38
    %s73 = sor.u32 %s71, %s72
    %p74 = scmp.eq.s32.totalorder %s73, 0
    %s76 = sadd.s32 %s75, 1
    %s77 = scalar_select %p74, %s75, %s76
    %p80 = pneg %p74
    %p81 = scmp.eq.s32.totalorder %s23, 1
    %p82 = por %p80, %p81
    %p83 = scmp.ne.s32.totalorder %s75, %s78
    %p84 = scmp.eq.s32.totalorder %s23, 0
    %p85 = por %p83, %p84
    %p86 = scmp.ne.s32.totalorder %s75, %s78
    %p87 = scmp.eq.s32.totalorder %s28, 1
    %p88 = por %p86, %p87
    %p89 = scmp.ne.s32.totalorder %s78, %s79
    %p90 = scmp.eq.s32.totalorder %s28, 0
    %p91 = por %p89, %p90
    %p92 = scmp.ne.s32.totalorder %s78, %s79
    %p93 = scmp.eq.s32.totalorder %s29, 1
    %p94 = por %p92, %p93
    %p96 = scmp.ne.s32.totalorder %s79, %s95
    %p97 = scmp.eq.s32.totalorder %s29, 0
    %p98 = por %p96, %p97
    %s99 = ssub.s32 %s30, %s42
    %s100 = ssub.s32 %s31, %s38
    %s101 = sor.u32 %s99, %s100
    %p102 = scmp.eq.s32.totalorder %s101, 0
    %s104 = sadd.s32 %s103, 1
    %s105 = scalar_select %p102, %s103, %s104
    %p108 = pneg %p102
    %p109 = scmp.eq.s32.totalorder %s23, 1
    %p110 = por %p108, %p109
    %p111 = scmp.ne.s32.totalorder %s103, %s106
    %p112 = scmp.eq.s32.totalorder %s23, 0
    %p113 = por %p111, %p112
    %p114 = scmp.ne.s32.totalorder %s103, %s106
    %p115 = scmp.eq.s32.totalorder %s28, 1
    %p116 = por %p114, %p115
    %p117 = scmp.ne.s32.totalorder %s106, %s107
    %p118 = scmp.eq.s32.totalorder %s28, 0
    %p119 = por %p117, %p118
    %p120 = scmp.ne.s32.totalorder %s106, %s107
    %p121 = scmp.eq.s32.totalorder %s29, 1
    %p122 = por %p120, %p121
    %p124 = scmp.ne.s32.totalorder %s107, %s123
    %p125 = scmp.eq.s32.totalorder %s29, 0
    %p126 = por %p124, %p125
    %s128 = sadd.s32 %s127, 1
    %p131 = scmp.eq.s32.totalorder %s23, 1
    %p132 = scmp.ne.s32.totalorder %s127, %s129
    %p133 = scmp.eq.s32.totalorder %s23, 0
    %p134 = por %p132, %p133
    %p135 = scmp.ne.s32.totalorder %s127, %s129
    %p136 = scmp.eq.s32.totalorder %s28, 1
    %p137 = por %p135, %p136
    %p138 = scmp.ne.s32.totalorder %s129, %s130
    %p139 = scmp.eq.s32.totalorder %s28, 0
    %p140 = por %p138, %p139
    %p141 = scmp.ne.s32.totalorder %s129, %s130
    %p142 = scmp.eq.s32.totalorder %s29, 1
    %p143 = por %p141, %p142
    %p145 = scmp.ne.s32.totalorder %s130, %s144
    %p146 = scmp.eq.s32.totalorder %s29, 0
    %p147 = por %p145, %p146
    %s149 = sadd.s32 %s148, 1
    %p152 = scmp.eq.s32.totalorder %s23, 1
    %p153 = scmp.ne.s32.totalorder %s148, %s150
    %p154 = scmp.eq.s32.totalorder %s23, 0
    %p155 = por %p153, %p154
    %p156 = scmp.ne.s32.totalorder %s148, %s150
    %p157 = scmp.eq.s32.totalorder %s28, 1
    %p158 = por %p156, %p157
    %p159 = scmp.ne.s32.totalorder %s150, %s151
    %p160 = scmp.eq.s32.totalorder %s28, 0
    %p161 = por %p159, %p160
    %p162 = scmp.ne.s32.totalorder %s150, %s151
    %p163 = scmp.eq.s32.totalorder %s29, 1
    %p164 = por %p162, %p163
    %p166 = scmp.ne.s32.totalorder %s151, %s165
    %p167 = scmp.eq.s32.totalorder %s29, 0
    %p168 = por %p166, %p167
    %s170 = sadd.s32 %s169, 1
    %p173 = scmp.eq.s32.totalorder %s23, 1
    %p174 = scmp.ne.s32.totalorder %s169, %s171
    %p175 = scmp.eq.s32.totalorder %s23, 0
    %p176 = por %p174, %p175
    %p177 = scmp.ne.s32.totalorder %s169, %s171
    %p178 = scmp.eq.s32.totalorder %s28, 1
    %p179 = por %p177, %p178
    %p180 = scmp.ne.s32.totalorder %s171, %s172
    %p181 = scmp.eq.s32.totalorder %s28, 0
    %p182 = por %p180, %p181
    %p183 = scmp.ne.s32.totalorder %s171, %s172
    %p184 = scmp.eq.s32.totalorder %s29, 1
    %p185 = por %p183, %p184
    %p187 = scmp.ne.s32.totalorder %s172, %s186
    %p188 = scmp.eq.s32.totalorder %s29, 0
    %p189 = por %p187, %p188
    %s191 = sadd.s32 %s190, 1
    %p194 = scmp.eq.s32.totalorder %s23, 1
    %p195 = scmp.ne.s32.totalorder %s190, %s192
    %p196 = scmp.eq.s32.totalorder %s23, 0
    %p197 = por %p195, %p196
    %p198 = scmp.ne.s32.totalorder %s190, %s192
    %p199 = scmp.eq.s32.totalorder %s28, 1
    %p200 = por %p198, %p199
    %p201 = scmp.ne.s32.totalorder %s192, %s193
    %p202 = scmp.eq.s32.totalorder %s28, 0
    %p203 = por %p201, %p202
    %p204 = scmp.ne.s32.totalorder %s192, %s193
    %p205 = scmp.eq.s32.totalorder %s29, 1
    %p206 = por %p204, %p205
    %p208 = scmp.ne.s32.totalorder %s193, %s207
    %p209 = scmp.eq.s32.totalorder %s29, 0
    %p210 = por %p208, %p209
    %s212 = sadd.s32 %s211, 1
    %p215 = scmp.eq.s32.totalorder %s23, 1
    %p216 = scmp.ne.s32.totalorder %s211, %s213
    %p217 = scmp.eq.s32.totalorder %s23, 0
    %p218 = por %p216, %p217
    %p219 = scmp.ne.s32.totalorder %s211, %s213
    %p220 = scmp.eq.s32.totalorder %s28, 1
    %p221 = por %p219, %p220
    %p222 = scmp.ne.s32.totalorder %s213, %s214
    %p223 = scmp.eq.s32.totalorder %s28, 0
    %p224 = por %p222, %p223
    %p225 = scmp.ne.s32.totalorder %s213, %s214
    %p226 = scmp.eq.s32.totalorder %s29, 1
    %p227 = por %p225, %p226
    %p229 = scmp.ne.s32.totalorder %s214, %s228
    %p230 = scmp.eq.s32.totalorder %s29, 0
    %p231 = por %p229, %p230
    %s233 = sadd.s32 %s232, 1
    %p236 = scmp.eq.s32.totalorder %s23, 1
    %p237 = scmp.ne.s32.totalorder %s232, %s234
    %p238 = scmp.eq.s32.totalorder %s23, 0
    %p239 = por %p237, %p238
    %p240 = scmp.ne.s32.totalorder %s232, %s234
    %p241 = scmp.eq.s32.totalorder %s28, 1
    %p242 = por %p240, %p241
    %p243 = scmp.ne.s32.totalorder %s234, %s235
    %p244 = scmp.eq.s32.totalorder %s28, 0
    %p245 = por %p243, %p244
    %p246 = scmp.ne.s32.totalorder %s234, %s235
    %p247 = scmp.eq.s32.totalorder %s29, 1
    %p248 = por %p246, %p247
    %p250 = scmp.ne.s32.totalorder %s235, %s249
    %p251 = scmp.eq.s32.totalorder %s29, 0
    %p252 = por %p250, %p251
    %s254 = sadd.s32 %s253, 1
    %p257 = scmp.eq.s32.totalorder %s23, 1
    %p258 = scmp.ne.s32.totalorder %s253, %s255
    %p259 = scmp.eq.s32.totalorder %s23, 0
    %p260 = por %p258, %p259
    %p261 = scmp.ne.s32.totalorder %s253, %s255
    %p262 = scmp.eq.s32.totalorder %s28, 1
    %p263 = por %p261, %p262
    %p264 = scmp.ne.s32.totalorder %s255, %s256
    %p265 = scmp.eq.s32.totalorder %s28, 0
    %p266 = por %p264, %p265
    %p267 = scmp.ne.s32.totalorder %s255, %s256
    %p268 = scmp.eq.s32.totalorder %s29, 1
    %p269 = por %p267, %p268
    %p271 = scmp.ne.s32.totalorder %s256, %s270
    %p272 = scmp.eq.s32.totalorder %s29, 0
    %p273 = por %p271, %p272
    %s275 = sadd.s32 %s274, 1
    %p278 = scmp.eq.s32.totalorder %s23, 1
    %p279 = scmp.ne.s32.totalorder %s274, %s276
    %p280 = scmp.eq.s32.totalorder %s23, 0
    %p281 = por %p279, %p280
    %p282 = scmp.ne.s32.totalorder %s274, %s276
    %p283 = scmp.eq.s32.totalorder %s28, 1
    %p284 = por %p282, %p283
    %p285 = scmp.ne.s32.totalorder %s276, %s277
    %p286 = scmp.eq.s32.totalorder %s28, 0
    %p287 = por %p285, %p286
    %p288 = scmp.ne.s32.totalorder %s276, %s277
    %p289 = scmp.eq.s32.totalorder %s29, 1
    %p290 = por %p288, %p289
    %p292 = scmp.ne.s32.totalorder %s277, %s291
    %p293 = scmp.eq.s32.totalorder %s29, 0
    %p294 = por %p292, %p293
    %s296 = sadd.s32 %s295, 1
    %p299 = scmp.eq.s32.totalorder %s23, 1
    %p300 = scmp.ne.s32.totalorder %s295, %s297
    %p301 = scmp.eq.s32.totalorder %s23, 0
    %p302 = por %p300, %p301
    %p303 = scmp.ne.s32.totalorder %s295, %s297
    %p304 = scmp.eq.s32.totalorder %s28, 1
    %p305 = por %p303, %p304
    %p306 = scmp.ne.s32.totalorder %s297, %s298
    %p307 = scmp.eq.s32.totalorder %s28, 0
    %p308 = por %p306, %p307
    %p309 = scmp.ne.s32.totalorder %s297, %s298
    %p310 = scmp.eq.s32.totalorder %s29, 1
    %p311 = por %p309, %p310
    %p313 = scmp.ne.s32.totalorder %s298, %s312
    %p314 = scmp.eq.s32.totalorder %s29, 0
    %p315 = por %p313, %p314
    %s317 = sadd.s32 %s316, 1
    %p320 = scmp.eq.s32.totalorder %s23, 1
    %p321 = scmp.ne.s32.totalorder %s316, %s318
    %p322 = scmp.eq.s32.totalorder %s23, 0
    %p323 = por %p321, %p322
    %p324 = scmp.ne.s32.totalorder %s316, %s318
    %p325 = scmp.eq.s32.totalorder %s28, 1
    %p326 = por %p324, %p325
    %p327 = scmp.ne.s32.totalorder %s318, %s319
    %p328 = scmp.eq.s32.totalorder %s28, 0
    %p329 = por %p327, %p328
    %p330 = scmp.ne.s32.totalorder %s318, %s319
    %p331 = scmp.eq.s32.totalorder %s29, 1
    %p332 = por %p330, %p331
    %p334 = scmp.ne.s32.totalorder %s319, %s333
    %p335 = scmp.eq.s32.totalorder %s29, 0
    %p336 = por %p334, %p335
    %s338 = sadd.s32 %s337, 1
    %p341 = scmp.eq.s32.totalorder %s23, 1
    %p342 = scmp.ne.s32.totalorder %s337, %s339
    %p343 = scmp.eq.s32.totalorder %s23, 0
    %p344 = por %p342, %p343
    %p345 = scmp.ne.s32.totalorder %s337, %s339
    %p346 = scmp.eq.s32.totalorder %s28, 1
    %p347 = por %p345, %p346
    %p348 = scmp.ne.s32.totalorder %s339, %s340
    %p349 = scmp.eq.s32.totalorder %s28, 0
    %p350 = por %p348, %p349
    %p351 = scmp.ne.s32.totalorder %s339, %s340
    %p352 = scmp.eq.s32.totalorder %s29, 1
    %p353 = por %p351, %p352
    %p355 = scmp.ne.s32.totalorder %s340, %s354
    %p356 = scmp.eq.s32.totalorder %s29, 0
    %p357 = por %p355, %p356
    %s359 = sadd.s32 %s358, 1
    %p362 = scmp.eq.s32.totalorder %s23, 1
    %p363 = scmp.ne.s32.totalorder %s358, %s360
    %p364 = scmp.eq.s32.totalorder %s23, 0
    %p365 = por %p363, %p364
    %p366 = scmp.ne.s32.totalorder %s358, %s360
    %p367 = scmp.eq.s32.totalorder %s28, 1
    %p368 = por %p366, %p367
    %p369 = scmp.ne.s32.totalorder %s360, %s361
    %p370 = scmp.eq.s32.totalorder %s28, 0
    %p371 = por %p369, %p370
    %p372 = scmp.ne.s32.totalorder %s360, %s361
    %p373 = scmp.eq.s32.totalorder %s29, 1
    %p374 = por %p372, %p373
    %p376 = scmp.ne.s32.totalorder %s361, %s375
    %p377 = scmp.eq.s32.totalorder %s29, 0
    %p378 = por %p376, %p377
    %s379 = ssub.s32 %s30, %s42
    %s380 = ssub.s32 %s31, %s38
    %s381 = sor.u32 %s379, %s380
    %p382 = scmp.eq.s32.totalorder %s381, 0
    %s384 = sadd.s32 %s383, 1
    %s385 = scalar_select %p382, %s383, %s384
    %p388 = pneg %p382
    %p389 = scmp.eq.s32.totalorder %s23, 1
    %p390 = por %p388, %p389
    %p391 = scmp.ne.s32.totalorder %s383, %s386
    %p392 = scmp.eq.s32.totalorder %s23, 0
    %p393 = por %p391, %p392
    %p394 = scmp.ne.s32.totalorder %s383, %s386
    %p395 = scmp.eq.s32.totalorder %s28, 1
    %p396 = por %p394, %p395
    %p397 = scmp.ne.s32.totalorder %s386, %s387
    %p398 = scmp.eq.s32.totalorder %s28, 0
    %p399 = por %p397, %p398
    %p400 = scmp.ne.s32.totalorder %s386, %s387
    %p401 = scmp.eq.s32.totalorder %s29, 1
    %p402 = por %p400, %p401
    %p404 = scmp.ne.s32.totalorder %s387, %s403
    %p405 = scmp.eq.s32.totalorder %s29, 0
    %p406 = por %p404, %p405
    %p407 = scmp.le.s32.totalorder 1, %s23
    %p408 = scmp.lt.s32.totalorder %s23, 3
    %p409 = pnand %p407, %p408
    %p410 = pneg %p409
    // Predicated region
    $region9: #{mask_head_forward.1} parent=5 // pred_check
      _
    $region10: #{mask_head_forward.1} parent=5 // pred_check_branch
      %412 = sbr.rel (%p409) target = $region12
    $region11: #{mask_head_forward.1} parent=5 // pred_region
      %s413 = ssub.s32 %s23, 1
      // Predicated region
      $region13: #{mask_head_forward.1} parent=11 // pred_check
        %p414 = pneg %p140
      $region14: #{mask_head_forward.1} parent=11 // pred_check_branch
        %416 = sbr.rel (%p414) target = $region16
      $region15: #{mask_head_forward.1} parent=11 // pred_region
        _
      $region16: #{mask_head_forward.1} parent=11 // pred_fallthru
        _
      // Predicated region
      $region17: #{mask_head_forward.1} parent=11 // pred_check
        %p417 = pneg %p161
      $region18: #{mask_head_forward.1} parent=11 // pred_check_branch
        %419 = sbr.rel (%p417) target = $region20
      $region19: #{mask_head_forward.1} parent=11 // pred_region
        _
      $region20: #{mask_head_forward.1} parent=11 // pred_fallthru
        _
      // Predicated region
      $region21: #{mask_head_forward.1} parent=11 // pred_check
        %p420 = pneg %p182
      $region22: #{mask_head_forward.1} parent=11 // pred_check_branch
        %422 = sbr.rel (%p420) target = $region24
      $region23: #{mask_head_forward.1} parent=11 // pred_region
        _
      $region24: #{mask_head_forward.1} parent=11 // pred_fallthru
        _
      // Predicated region
      $region25: #{mask_head_forward.1} parent=11 // pred_check
        %p423 = pneg %p203
      $region26: #{mask_head_forward.1} parent=11 // pred_check_branch
        %425 = sbr.rel (%p423) target = $region28
      $region27: #{mask_head_forward.1} parent=11 // pred_region
        _
      $region28: #{mask_head_forward.1} parent=11 // pred_fallthru
        _
      // Predicated region
      $region29: #{mask_head_forward.1} parent=11 // pred_check
        %p426 = pneg %p224
      $region30: #{mask_head_forward.1} parent=11 // pred_check_branch
        %428 = sbr.rel (%p426) target = $region32
      $region31: #{mask_head_forward.1} parent=11 // pred_region
        _
      $region32: #{mask_head_forward.1} parent=11 // pred_fallthru
        _
      // Predicated region
      $region33: #{mask_head_forward.1} parent=11 // pred_check
        %p429 = pneg %p245
      $region34: #{mask_head_forward.1} parent=11 // pred_check_branch
        %431 = sbr.rel (%p429) target = $region36
      $region35: #{mask_head_forward.1} parent=11 // pred_region
        _
      $region36: #{mask_head_forward.1} parent=11 // pred_fallthru
        _
      // Predicated region
      $region37: #{mask_head_forward.1} parent=11 // pred_check
        %p432 = pneg %p266
      $region38: #{mask_head_forward.1} parent=11 // pred_check_branch
        %434 = sbr.rel (%p432) target = $region40
      $region39: #{mask_head_forward.1} parent=11 // pred_region
        _
      $region40: #{mask_head_forward.1} parent=11 // pred_fallthru
        _
      // Predicated region
      $region41: #{mask_head_forward.1} parent=11 // pred_check
        %p435 = pneg %p287
      $region42: #{mask_head_forward.1} parent=11 // pred_check_branch
        %437 = sbr.rel (%p435) target = $region44
      $region43: #{mask_head_forward.1} parent=11 // pred_region
        _
      $region44: #{mask_head_forward.1} parent=11 // pred_fallthru
        _
      // Predicated region
      $region45: #{mask_head_forward.1} parent=11 // pred_check
        %p438 = pneg %p308
      $region46: #{mask_head_forward.1} parent=11 // pred_check_branch
        %440 = sbr.rel (%p438) target = $region48
      $region47: #{mask_head_forward.1} parent=11 // pred_region
        _
      $region48: #{mask_head_forward.1} parent=11 // pred_fallthru
        _
      // Predicated region
      $region49: #{mask_head_forward.1} parent=11 // pred_check
        %p441 = pneg %p329
      $region50: #{mask_head_forward.1} parent=11 // pred_check_branch
        %443 = sbr.rel (%p441) target = $region52
      $region51: #{mask_head_forward.1} parent=11 // pred_region
        _
      $region52: #{mask_head_forward.1} parent=11 // pred_fallthru
        _
      // Predicated region
      $region53: #{mask_head_forward.1} parent=11 // pred_check
        %p444 = pneg %p350
      $region54: #{mask_head_forward.1} parent=11 // pred_check_branch
        %446 = sbr.rel (%p444) target = $region56
      $region55: #{mask_head_forward.1} parent=11 // pred_region
        _
      $region56: #{mask_head_forward.1} parent=11 // pred_fallthru
        _
      // Predicated region
      $region57: #{mask_head_forward.1} parent=11 // pred_check
        %p447 = pneg %p371
      $region58: #{mask_head_forward.1} parent=11 // pred_check_branch
        %449 = sbr.rel (%p447) target = $region60
      $region59: #{mask_head_forward.1} parent=11 // pred_region
        _
      $region60: #{mask_head_forward.1} parent=11 // pred_fallthru
        _
    $region12: #{mask_head_forward.1} parent=5 // pred_fallthru
      _
    %p450 = scmp.lt.s32.totalorder %s23, 2
    // Predicated region
    $region61: #{mask_head_forward.1} parent=5 // pred_check
      %p451 = pneg %p450
    $region62: #{mask_head_forward.1} parent=5 // pred_check_branch
      %453 = sbr.rel (%p451) target = $region64
    $region63: #{mask_head_forward.1} parent=5 // pred_region
      // Predicated region
      $region65: #{mask_head_forward.1} parent=63 // pred_check
        %p454 = pneg %p57
      $region66: #{mask_head_forward.1} parent=63 // pred_check_branch
        %456 = sbr.rel (%p454) target = $region68
      $region67: #{mask_head_forward.1} parent=63 // pred_region
        %s457 = smul.u32 8, %s31
        %p458 = scmp.lt.s32.totalorder %s30, 1
        %s459 = scalar_select %p458, %s30, 1
        %p460 = scmp.lt.s32.totalorder %s457, 7
        %s461 = scalar_select %p460, %s457, 7
        %s462 = smul.addr %s459, 8
        %s463 = sadd.s32 %s461, %s462
        %s464 = smul.addr %s463, 4
        %s465 = scalar_lea.vmem %s0, %s464
        %s466 = smul.u32 8, %s31
      $region68: #{mask_head_forward.1} parent=63 // pred_fallthru
        _
      // Predicated region
      $region69: #{mask_head_forward.1} parent=63 // pred_check
        %p467 = pneg %p85
      $region70: #{mask_head_forward.1} parent=63 // pred_check_branch
        %469 = sbr.rel (%p467) target = $region72
      $region71: #{mask_head_forward.1} parent=63 // pred_region
        %s470 = smul.u32 8, %s31
        %p471 = scmp.lt.s32.totalorder %s30, 1
        %s472 = scalar_select %p471, %s30, 1
        %p473 = scmp.lt.s32.totalorder %s470, 7
        %s474 = scalar_select %p473, %s470, 7
        %s475 = smul.addr %s474, 8
        %s476 = smul.addr %s472, 64
        %s477 = sadd.s32 %s475, %s476
        %s478 = smul.addr %s477, 4
        %s479 = scalar_lea.vmem %s1, %s478
        %s480 = smul.u32 8, %s31
      $region72: #{mask_head_forward.1} parent=63 // pred_fallthru
        _
      // Predicated region
      $region73: #{mask_head_forward.1} parent=63 // pred_check
        %p481 = pneg %p113
      $region74: #{mask_head_forward.1} parent=63 // pred_check_branch
        %483 = sbr.rel (%p481) target = $region76
      $region75: #{mask_head_forward.1} parent=63 // pred_region
        %s484 = smul.u32 8, %s31
        %p485 = scmp.lt.s32.totalorder %s30, 1
        %s486 = scalar_select %p485, %s30, 1
        %p487 = scmp.lt.s32.totalorder %s484, 7
        %s488 = scalar_select %p487, %s484, 7
        %s489 = smul.addr %s488, 4
        %s490 = smul.addr %s486, 32
        %s491 = sadd.s32 %s489, %s490
        %s492 = smul.addr %s491, 4
        %s493 = scalar_lea.vmem %s2, %s492
        %s494 = smul.u32 8, %s31
      $region76: #{mask_head_forward.1} parent=63 // pred_fallthru
        _
    $region64: #{mask_head_forward.1} parent=5 // pred_fallthru
      _
    %p495 = scmp.le.s32.totalorder 1, %s23
    %p496 = scmp.lt.s32.totalorder %s23, 3
    %p497 = pnand %p495, %p496
    %p498 = pneg %p497
    // Predicated region
    $region77: #{mask_head_forward.1} parent=5 // pred_check
      _
    $region78: #{mask_head_forward.1} parent=5 // pred_check_branch
      %500 = sbr.rel (%p497) target = $region80
    $region79: #{mask_head_forward.1} parent=5 // pred_region
      %s501 = ssub.s32 %s23, 1
      %s502 = smul.u32 8, %s33
      %p503 = scmp.lt.s32.totalorder %s32, 1
      %s504 = scalar_select %p503, %s32, 1
      %p505 = scmp.lt.s32.totalorder %s502, 7
      %s506 = scalar_select %p505, %s502, 7
      %s507 = smul.addr %s504, 8
      %s508 = sadd.s32 %s506, %s507
      %s509 = smul.addr %s508, 4
      %s510 = scalar_lea.vmem %s0, %s509
      %p511 = pneg %p63
      %p512 = pneg %p60
      %s513 = smul.u32 8, %s33
      %p514 = scmp.lt.s32.totalorder %s32, 1
      %s515 = scalar_select %p514, %s32, 1
      %p516 = scmp.lt.s32.totalorder %s513, 7
      %s517 = scalar_select %p516, %s513, 7
      %s518 = smul.addr %s517, 8
      %s519 = smul.addr %s515, 64
      %s520 = sadd.s32 %s518, %s519
      %s521 = smul.addr %s520, 4
      %s522 = scalar_lea.vmem %s1, %s521
      %p523 = pneg %p91
      %p524 = pneg %p88
      %s525 = smul.u32 8, %s33
      %p526 = scmp.lt.s32.totalorder %s32, 1
      %s527 = scalar_select %p526, %s32, 1
      %p528 = scmp.lt.s32.totalorder %s525, 7
      %s529 = scalar_select %p528, %s525, 7
      %s530 = smul.addr %s529, 4
      %s531 = smul.addr %s527, 32
      %s532 = sadd.s32 %s530, %s531
      %s533 = smul.addr %s532, 4
      %s534 = scalar_lea.vmem %s2, %s533
      %p535 = pneg %p119
      %p536 = pneg %p116
      %p537 = pneg %p140
      %p538 = pneg %p137
      %p539 = pneg %p161
      %p540 = pneg %p158
      %p541 = pneg %p182
      %p542 = pneg %p179
      %p543 = pneg %p203
      %p544 = pneg %p200
      %p545 = pneg %p224
      %p546 = pneg %p221
      %p547 = pneg %p245
      %p548 = pneg %p242
      %p549 = pneg %p266
      %p550 = pneg %p263
      %p551 = pneg %p287
      %p552 = pneg %p284
      %p553 = pneg %p308
      %p554 = pneg %p305
      %p555 = pneg %p329
      %p556 = pneg %p326
      %p557 = pneg %p350
      %p558 = pneg %p347
      %p559 = pneg %p371
      %p560 = pneg %p368
      %p561 = pneg %p399
      %p562 = pneg %p396
      %s563 = smul.u32 8, %s33
      %p564 = scmp.lt.s32.totalorder %s32, 1
      %s565 = scalar_select %p564, %s32, 1
      %p566 = scmp.lt.s32.totalorder %s563, 7
      %s567 = scalar_select %p566, %s563, 7
      %s568 = smul.addr %s565, 8
      %s569 = sadd.s32 %s567, %s568
      %s570 = smul.addr %s569, 8
      %s571 = scalar_lea.vmem %s15, %s570
      %s572 = smul.u32 8, %s33
      %p573 = scmp.lt.s32.totalorder %s32, 1
      %s574 = scalar_select %p573, %s32, 1
      %p575 = scmp.lt.s32.totalorder %s572, 7
      %s576 = scalar_select %p575, %s572, 7
      %s577 = smul.addr %s574, 8
      %s578 = sadd.s32 %s576, %s577
      %s579 = smul.addr %s578, 4
      %s580 = scalar_lea.vmem %s0, %s579
      %s581 = smul.u32 8, %s33
      %s582 = smul.u32 8, %s33
      %p583 = scmp.lt.s32.totalorder %s32, 1
      %s584 = scalar_select %p583, %s32, 1
      %p585 = scmp.lt.s32.totalorder %s582, 7
      %s586 = scalar_select %p585, %s582, 7
      %s587 = smul.addr %s586, 8
      %s588 = smul.addr %s584, 64
      %s589 = sadd.s32 %s587, %s588
      %s590 = smul.addr %s589, 4
      %s591 = scalar_lea.vmem %s1, %s590
      %s592 = smul.u32 8, %s33
      %s593 = smul.u32 8, %s33
      %p594 = scmp.lt.s32.totalorder %s32, 1
      %s595 = scalar_select %p594, %s32, 1
      %p596 = scmp.lt.s32.totalorder %s593, 7
      %s597 = scalar_select %p596, %s593, 7
      %s598 = smul.addr %s597, 4
      %s599 = smul.addr %s595, 32
      %s600 = sadd.s32 %s598, %s599
      %s601 = smul.addr %s600, 4
      %s602 = scalar_lea.vmem %s2, %s601
      %s603 = smul.u32 8, %s33
      %s604 = smul.u32 8, %s33
      %p605 = scmp.lt.s32.totalorder %s32, 1
      %s606 = scalar_select %p605, %s32, 1
      %p607 = scmp.lt.s32.totalorder %s604, 7
      %s608 = scalar_select %p607, %s604, 7
      %s609 = smul.addr %s606, 8
      %s610 = sadd.s32 %s608, %s609
      %s611 = smul.addr %s610, 8
      %s612 = scalar_lea.vmem %s15, %s611
      %s613 = smul.u32 8, %s33
      %v615 = vld [vmem:[%s580] sm:$0xf]
      %v616 = vld [vmem:[%s580 + $0x4] sm:$0xf]
      %v617 = vld [vmem:[%s580 + $0x8] sm:$0xf]
      %v618 = vld [vmem:[%s580 + $0xc] sm:$0xf]
      %v619 = vld [vmem:[%s580 + $0x10] sm:$0xf]
      %v620 = vld [vmem:[%s580 + $0x14] sm:$0xf]
      %v621 = vld [vmem:[%s580 + $0x18] sm:$0xf]
      %v622 = vld [vmem:[%s580 + $0x1c] sm:$0xf]
      %v623 = vld [vmem:[%s3] sm:$0xf]
      %v624 = vld [vmem:[%s3 + $0x4] sm:$0xf]
      %v625 = vld [vmem:[%s3 + $0x8] sm:$0xf]
      %v626 = vld [vmem:[%s3 + $0xc] sm:$0xf]
      %v627 = vld [vmem:[%s3 + $0x10] sm:$0xf]
      %v628 = vld [vmem:[%s3 + $0x14] sm:$0xf]
      %v629 = vld [vmem:[%s3 + $0x18] sm:$0xf]
      %v630 = vld [vmem:[%s3 + $0x1c] sm:$0xf]
      %v631 = vld [vmem:[%s3 + $0x20] sm:$0xf]
      %v632 = vld [vmem:[%s3 + $0x24] sm:$0xf]
      %v633 = vld [vmem:[%s3 + $0x28] sm:$0xf]
      %v634 = vld [vmem:[%s3 + $0x2c] sm:$0xf]
      %v635 = vld [vmem:[%s3 + $0x30] sm:$0xf]
      %v636 = vld [vmem:[%s3 + $0x34] sm:$0xf]
      %v637 = vld [vmem:[%s3 + $0x38] sm:$0xf]
      %v638 = vld [vmem:[%s3 + $0x3c] sm:$0xf]
      %v639 = vld [vmem:[%s4] sm:$0x1]
      %v641 = vlaneseq
      %v642 = vshrl.u32 %v641, 7
      %v643 = vsub.s32 0, %v642
      %v644 = vrot.slane %v639, %v643
      %v654 = vunpack.c.l.b16 %v615
      %v655 = vunpack.c.l.b16 %v616
      %v656 = vunpack.c.l.b16 %v617
      %v657 = vunpack.c.l.b16 %v618
      %v658 = vunpack.c.l.b16 %v619
      %v659 = vunpack.c.l.b16 %v620
      %v660 = vunpack.c.l.b16 %v621
      %v661 = vunpack.c.l.b16 %v622
      %v662 = vpack.c.b16 %v655, %v654
      %v663 = vpack.c.b16 %v657, %v656
      %v664 = vpack.c.b16 %v659, %v658
      %v665 = vpack.c.b16 %v661, %v660
      %v686 = vunpack.c.l.b16 %v623
      %v687 = vunpack.c.l.b16 %v624
      %v688 = vunpack.c.l.b16 %v625
      %v689 = vunpack.c.l.b16 %v626
      %v690 = vunpack.c.l.b16 %v627
      %v691 = vunpack.c.l.b16 %v628
      %v692 = vunpack.c.l.b16 %v629
      %v693 = vunpack.c.l.b16 %v630
      %v694 = vunpack.c.l.b16 %v631
      %v695 = vunpack.c.l.b16 %v632
      %v696 = vunpack.c.l.b16 %v633
      %v697 = vunpack.c.l.b16 %v634
      %v698 = vunpack.c.l.b16 %v635
      %v699 = vunpack.c.l.b16 %v636
      %v700 = vunpack.c.l.b16 %v637
      %v701 = vunpack.c.l.b16 %v638
      %v702 = vpack.c.b16 %v687, %v686
      %v703 = vpack.c.b16 %v689, %v688
      %v704 = vpack.c.b16 %v691, %v690
      %v705 = vpack.c.b16 %v693, %v692
      %v706 = vpack.c.b16 %v695, %v694
      %v707 = vpack.c.b16 %v697, %v696
      %v708 = vpack.c.b16 %v699, %v698
      %v709 = vpack.c.b16 %v701, %v700
      %718 = vmatprep.subr.bf16.mxu0 0
      %719 = vmatpush1.bf16.msra.mxu0 %v709
      %720 = vmatprep.subr.bf16.mxu0 0
      %721 = vmatpush1.bf16.msra.mxu0 %v708
      %722 = vmatprep.subr.bf16.mxu0 0
      %723 = vmatpush1.bf16.msra.mxu0 %v707
      %724 = vmatprep.subr.bf16.mxu0 0
      %725 = vmatpush1.bf16.msra.mxu0 %v706
      %726 = vmatprep.subr.bf16.mxu0 0
      %727 = vmatpush1.bf16.msra.mxu0 %v705
      %728 = vmatprep.subr.bf16.mxu0 0
      %729 = vmatpush1.bf16.msra.mxu0 %v704
      %730 = vmatprep.subr.bf16.mxu0 0
      %731 = vmatpush1.bf16.msra.mxu0 %v703
      %732 = vmatprep.subr.bf16.mxu0 0
      %733 = vmatpush1.bf16.msra.mxu0 %v702
      %734 = vmatprep.subr.bf16.mxu0 0
      %735 = vmatpush2.bf16.msra.mxu0 0
      %736 = vmatprep.subr.bf16.mxu0 0
      %737 = vmatpush2.bf16.msra.mxu0 0
      %738 = vmatprep.subr.bf16.mxu0 0
      %739 = vmatpush2.bf16.msra.mxu0 0
      %740 = vmatprep.subr.bf16.mxu0 0
      %741 = vmatpush2.bf16.msra.mxu0 0
      %742 = vmatprep.subr.bf16.mxu0 0
      %743 = vmatpush2.bf16.msra.mxu0 0
      %744 = vmatprep.subr.bf16.mxu0 0
      %745 = vmatpush2.bf16.msra.mxu0 0
      %746 = vmatprep.subr.bf16.mxu0 0
      %747 = vmatpush2.bf16.msra.mxu0 0
      %748 = vmatprep.subr.bf16.mxu0 0
      %749 = vmatpush2.bf16.msra.mxu0 0
      %750 = vmatprep.mubr.bf16.mxu0 0
      %751 = vmatmul.mubr.bf16.gmra.mxu0 %v662
      %v752 = vpop.f32.mrf.mxu0
      %v753 = vadd.f32 %v644, %v752
      %v754 = vpop.f32.mrf.mxu0
      %v755 = vpop.f32.mrf.mxu0
      %v756 = vadd.f32 %v644, %v755
      %v757 = vpop.f32.mrf.mxu0
      %758 = vmatprep.mubr.bf16.mxu0 0
      %759 = vmatmul.mubr.bf16.gmra.mxu0 %v663
      %v760 = vpop.f32.mrf.mxu0
      %v761 = vadd.f32 %v644, %v760
      %v762 = vpop.f32.mrf.mxu0
      %v763 = vpop.f32.mrf.mxu0
      %v764 = vadd.f32 %v644, %v763
      %v765 = vpop.f32.mrf.mxu0
      %766 = vmatprep.mubr.bf16.mxu0 0
      %767 = vmatmul.mubr.bf16.gmra.mxu0 %v664
      %v768 = vpop.f32.mrf.mxu0
      %v769 = vadd.f32 %v644, %v768
      %v770 = vpop.f32.mrf.mxu0
      %v771 = vpop.f32.mrf.mxu0
      %v772 = vadd.f32 %v644, %v771
      %v773 = vpop.f32.mrf.mxu0
      %774 = vmatprep.mubr.bf16.mxu0 0
      %775 = vmatmul.mubr.bf16.gmra.mxu0 %v665
      %v776 = vpop.f32.mrf.mxu0
      %v777 = vadd.f32 %v644, %v776
      %v778 = vpop.f32.mrf.mxu0
      %v779 = vpop.f32.mrf.mxu0
      %v780 = vadd.f32 %v644, %v779
      %v781 = vpop.f32.mrf.mxu0
      %782 = vdwg.mxu0
      %v783 = vld [vmem:[%s591] sm:$0xff]
      %v784 = vld [vmem:[%s591 + $0x8] sm:$0xff]
      %v785 = vld [vmem:[%s591 + $0x10] sm:$0xff]
      %v786 = vld [vmem:[%s591 + $0x18] sm:$0xff]
      %v787 = vld [vmem:[%s591 + $0x20] sm:$0xff]
      %v788 = vld [vmem:[%s591 + $0x28] sm:$0xff]
      %v789 = vld [vmem:[%s591 + $0x30] sm:$0xff]
      %v790 = vld [vmem:[%s591 + $0x38] sm:$0xff]
      %v791 = vld [vmem:[%s591 + $0x40] sm:$0xff]
      %v792 = vld [vmem:[%s591 + $0x48] sm:$0xff]
      %v793 = vld [vmem:[%s591 + $0x50] sm:$0xff]
      %v794 = vld [vmem:[%s591 + $0x58] sm:$0xff]
      %v795 = vld [vmem:[%s591 + $0x60] sm:$0xff]
      %v796 = vld [vmem:[%s591 + $0x68] sm:$0xff]
      %v797 = vld [vmem:[%s591 + $0x70] sm:$0xff]
      %v798 = vld [vmem:[%s591 + $0x78] sm:$0xff]
      %v799 = vld [vmem:[%s591 + $0x80] sm:$0xff]
      %v800 = vld [vmem:[%s591 + $0x88] sm:$0xff]
      %v801 = vld [vmem:[%s591 + $0x90] sm:$0xff]
      %v802 = vld [vmem:[%s591 + $0x98] sm:$0xff]
      %v803 = vld [vmem:[%s591 + $0xa0] sm:$0xff]
      %v804 = vld [vmem:[%s591 + $0xa8] sm:$0xff]
      %v805 = vld [vmem:[%s591 + $0xb0] sm:$0xff]
      %v806 = vld [vmem:[%s591 + $0xb8] sm:$0xff]
      %v807 = vld [vmem:[%s591 + $0xc0] sm:$0xff]
      %v808 = vld [vmem:[%s591 + $0xc8] sm:$0xff]
      %v809 = vld [vmem:[%s591 + $0xd0] sm:$0xff]
      %v810 = vld [vmem:[%s591 + $0xd8] sm:$0xff]
      %v811 = vld [vmem:[%s591 + $0xe0] sm:$0xff]
      %v812 = vld [vmem:[%s591 + $0xe8] sm:$0xff]
      %v813 = vld [vmem:[%s591 + $0xf0] sm:$0xff]
      %v814 = vld [vmem:[%s591 + $0xf8] sm:$0xff]
      %v815 = vld [vmem:[%s5] sm:$0xf]
      %v816 = vld [vmem:[%s5 + $0x4] sm:$0xf]
      %v817 = vld [vmem:[%s5 + $0x8] sm:$0xf]
      %v818 = vld [vmem:[%s5 + $0xc] sm:$0xf]
      %v819 = vld [vmem:[%s5 + $0x10] sm:$0xf]
      %v820 = vld [vmem:[%s5 + $0x14] sm:$0xf]
      %v821 = vld [vmem:[%s5 + $0x18] sm:$0xf]
      %v822 = vld [vmem:[%s5 + $0x1c] sm:$0xf]
      %v823 = vld [vmem:[%s5 + $0x20] sm:$0xf]
      %v824 = vld [vmem:[%s5 + $0x24] sm:$0xf]
      %v825 = vld [vmem:[%s5 + $0x28] sm:$0xf]
      %v826 = vld [vmem:[%s5 + $0x2c] sm:$0xf]
      %v827 = vld [vmem:[%s5 + $0x30] sm:$0xf]
      %v828 = vld [vmem:[%s5 + $0x34] sm:$0xf]
      %v829 = vld [vmem:[%s5 + $0x38] sm:$0xf]
      %v830 = vld [vmem:[%s5 + $0x3c] sm:$0xf]
      %v831 = vld [vmem:[%s5 + $0x40] sm:$0xf]
      %v832 = vld [vmem:[%s5 + $0x44] sm:$0xf]
      %v833 = vld [vmem:[%s5 + $0x48] sm:$0xf]
      %v834 = vld [vmem:[%s5 + $0x4c] sm:$0xf]
      %v835 = vld [vmem:[%s5 + $0x50] sm:$0xf]
      %v836 = vld [vmem:[%s5 + $0x54] sm:$0xf]
      %v837 = vld [vmem:[%s5 + $0x58] sm:$0xf]
      %v838 = vld [vmem:[%s5 + $0x5c] sm:$0xf]
      %v839 = vld [vmem:[%s5 + $0x60] sm:$0xf]
      %v840 = vld [vmem:[%s5 + $0x64] sm:$0xf]
      %v841 = vld [vmem:[%s5 + $0x68] sm:$0xf]
      %v842 = vld [vmem:[%s5 + $0x6c] sm:$0xf]
      %v843 = vld [vmem:[%s5 + $0x70] sm:$0xf]
      %v844 = vld [vmem:[%s5 + $0x74] sm:$0xf]
      %v845 = vld [vmem:[%s5 + $0x78] sm:$0xf]
      %v846 = vld [vmem:[%s5 + $0x7c] sm:$0xf]
      %v847 = vld [vmem:[%s5 + $0x80] sm:$0xf]
      %v848 = vld [vmem:[%s5 + $0x84] sm:$0xf]
      %v849 = vld [vmem:[%s5 + $0x88] sm:$0xf]
      %v850 = vld [vmem:[%s5 + $0x8c] sm:$0xf]
      %v851 = vld [vmem:[%s5 + $0x90] sm:$0xf]
      %v852 = vld [vmem:[%s5 + $0x94] sm:$0xf]
      %v853 = vld [vmem:[%s5 + $0x98] sm:$0xf]
      %v854 = vld [vmem:[%s5 + $0x9c] sm:$0xf]
      %v855 = vld [vmem:[%s5 + $0xa0] sm:$0xf]
      %v856 = vld [vmem:[%s5 + $0xa4] sm:$0xf]
      %v857 = vld [vmem:[%s5 + $0xa8] sm:$0xf]
      %v858 = vld [vmem:[%s5 + $0xac] sm:$0xf]
      %v859 = vld [vmem:[%s5 + $0xb0] sm:$0xf]
      %v860 = vld [vmem:[%s5 + $0xb4] sm:$0xf]
      %v861 = vld [vmem:[%s5 + $0xb8] sm:$0xf]
      %v862 = vld [vmem:[%s5 + $0xbc] sm:$0xf]
      %v863 = vld [vmem:[%s5 + $0xc0] sm:$0xf]
      %v864 = vld [vmem:[%s5 + $0xc4] sm:$0xf]
      %v865 = vld [vmem:[%s5 + $0xc8] sm:$0xf]
      %v866 = vld [vmem:[%s5 + $0xcc] sm:$0xf]
      %v867 = vld [vmem:[%s5 + $0xd0] sm:$0xf]
      %v868 = vld [vmem:[%s5 + $0xd4] sm:$0xf]
      %v869 = vld [vmem:[%s5 + $0xd8] sm:$0xf]
      %v870 = vld [vmem:[%s5 + $0xdc] sm:$0xf]
      %v871 = vld [vmem:[%s5 + $0xe0] sm:$0xf]
      %v872 = vld [vmem:[%s5 + $0xe4] sm:$0xf]
      %v873 = vld [vmem:[%s5 + $0xe8] sm:$0xf]
      %v874 = vld [vmem:[%s5 + $0xec] sm:$0xf]
      %v875 = vld [vmem:[%s5 + $0xf0] sm:$0xf]
      %v876 = vld [vmem:[%s5 + $0xf4] sm:$0xf]
      %v877 = vld [vmem:[%s5 + $0xf8] sm:$0xf]
      %v878 = vld [vmem:[%s5 + $0xfc] sm:$0xf]
      %v879 = vld [vmem:[%s5 + $0x100] sm:$0xf]
      %v880 = vld [vmem:[%s5 + $0x104] sm:$0xf]
      %v881 = vld [vmem:[%s5 + $0x108] sm:$0xf]
      %v882 = vld [vmem:[%s5 + $0x10c] sm:$0xf]
      %v883 = vld [vmem:[%s5 + $0x110] sm:$0xf]
      %v884 = vld [vmem:[%s5 + $0x114] sm:$0xf]
      %v885 = vld [vmem:[%s5 + $0x118] sm:$0xf]
      %v886 = vld [vmem:[%s5 + $0x11c] sm:$0xf]
      %v887 = vld [vmem:[%s5 + $0x120] sm:$0xf]
      %v888 = vld [vmem:[%s5 + $0x124] sm:$0xf]
      %v889 = vld [vmem:[%s5 + $0x128] sm:$0xf]
      %v890 = vld [vmem:[%s5 + $0x12c] sm:$0xf]
      %v891 = vld [vmem:[%s5 + $0x130] sm:$0xf]
      %v892 = vld [vmem:[%s5 + $0x134] sm:$0xf]
      %v893 = vld [vmem:[%s5 + $0x138] sm:$0xf]
      %v894 = vld [vmem:[%s5 + $0x13c] sm:$0xf]
      %v895 = vld [vmem:[%s5 + $0x140] sm:$0xf]
      %v896 = vld [vmem:[%s5 + $0x144] sm:$0xf]
      %v897 = vld [vmem:[%s5 + $0x148] sm:$0xf]
      %v898 = vld [vmem:[%s5 + $0x14c] sm:$0xf]
      %v899 = vld [vmem:[%s5 + $0x150] sm:$0xf]
      %v900 = vld [vmem:[%s5 + $0x154] sm:$0xf]
      %v901 = vld [vmem:[%s5 + $0x158] sm:$0xf]
      %v902 = vld [vmem:[%s5 + $0x15c] sm:$0xf]
      %v903 = vld [vmem:[%s5 + $0x160] sm:$0xf]
      %v904 = vld [vmem:[%s5 + $0x164] sm:$0xf]
      %v905 = vld [vmem:[%s5 + $0x168] sm:$0xf]
      %v906 = vld [vmem:[%s5 + $0x16c] sm:$0xf]
      %v907 = vld [vmem:[%s5 + $0x170] sm:$0xf]
      %v908 = vld [vmem:[%s5 + $0x174] sm:$0xf]
      %v909 = vld [vmem:[%s5 + $0x178] sm:$0xf]
      %v910 = vld [vmem:[%s5 + $0x17c] sm:$0xf]
      %v911 = vld [vmem:[%s5 + $0x180] sm:$0xf]
      %v912 = vld [vmem:[%s5 + $0x184] sm:$0xf]
      %v913 = vld [vmem:[%s5 + $0x188] sm:$0xf]
      %v914 = vld [vmem:[%s5 + $0x18c] sm:$0xf]
      %v915 = vld [vmem:[%s5 + $0x190] sm:$0xf]
      %v916 = vld [vmem:[%s5 + $0x194] sm:$0xf]
      %v917 = vld [vmem:[%s5 + $0x198] sm:$0xf]
      %v918 = vld [vmem:[%s5 + $0x19c] sm:$0xf]
      %v919 = vld [vmem:[%s5 + $0x1a0] sm:$0xf]
      %v920 = vld [vmem:[%s5 + $0x1a4] sm:$0xf]
      %v921 = vld [vmem:[%s5 + $0x1a8] sm:$0xf]
      %v922 = vld [vmem:[%s5 + $0x1ac] sm:$0xf]
      %v923 = vld [vmem:[%s5 + $0x1b0] sm:$0xf]
      %v924 = vld [vmem:[%s5 + $0x1b4] sm:$0xf]
      %v925 = vld [vmem:[%s5 + $0x1b8] sm:$0xf]
      %v926 = vld [vmem:[%s5 + $0x1bc] sm:$0xf]
      %v927 = vld [vmem:[%s5 + $0x1c0] sm:$0xf]
      %v928 = vld [vmem:[%s5 + $0x1c4] sm:$0xf]
      %v929 = vld [vmem:[%s5 + $0x1c8] sm:$0xf]
      %v930 = vld [vmem:[%s5 + $0x1cc] sm:$0xf]
      %v931 = vld [vmem:[%s5 + $0x1d0] sm:$0xf]
      %v932 = vld [vmem:[%s5 + $0x1d4] sm:$0xf]
      %v933 = vld [vmem:[%s5 + $0x1d8] sm:$0xf]
      %v934 = vld [vmem:[%s5 + $0x1dc] sm:$0xf]
      %v935 = vld [vmem:[%s5 + $0x1e0] sm:$0xf]
      %v936 = vld [vmem:[%s5 + $0x1e4] sm:$0xf]
      %v937 = vld [vmem:[%s5 + $0x1e8] sm:$0xf]
      %v938 = vld [vmem:[%s5 + $0x1ec] sm:$0xf]
      %v939 = vld [vmem:[%s5 + $0x1f0] sm:$0xf]
      %v940 = vld [vmem:[%s5 + $0x1f4] sm:$0xf]
      %v941 = vld [vmem:[%s5 + $0x1f8] sm:$0xf]
      %v942 = vld [vmem:[%s5 + $0x1fc] sm:$0xf]
      %v943 = vld [vmem:[%s6] sm:$0x1]
      %v945 = vlaneseq
      %v946 = vshrl.u32 %v945, 7
      %v947 = vsub.s32 0, %v946
      %v948 = vrot.slane %v943, %v947
      %v982 = vunpack.c.l.b16 %v783
      %v983 = vunpack.c.h.b16 %v783
      %v984 = vunpack.c.l.b16 %v784
      %v985 = vunpack.c.h.b16 %v784
      %v986 = vunpack.c.l.b16 %v785
      %v987 = vunpack.c.h.b16 %v785
      %v988 = vunpack.c.l.b16 %v786
      %v989 = vunpack.c.h.b16 %v786
      %v990 = vunpack.c.l.b16 %v787
      %v991 = vunpack.c.h.b16 %v787
      %v992 = vunpack.c.l.b16 %v788
      %v993 = vunpack.c.h.b16 %v788
      %v994 = vunpack.c.l.b16 %v789
      %v995 = vunpack.c.h.b16 %v789
      %v996 = vunpack.c.l.b16 %v790
      %v997 = vunpack.c.h.b16 %v790
      %v998 = vunpack.c.l.b16 %v791
      %v999 = vunpack.c.h.b16 %v791
      %v1000 = vunpack.c.l.b16 %v792
      %v1001 = vunpack.c.h.b16 %v792
      %v1002 = vunpack.c.l.b16 %v793
      %v1003 = vunpack.c.h.b16 %v793
      %v1004 = vunpack.c.l.b16 %v794
      %v1005 = vunpack.c.h.b16 %v794
      %v1006 = vunpack.c.l.b16 %v795
      %v1007 = vunpack.c.h.b16 %v795
      %v1008 = vunpack.c.l.b16 %v796
      %v1009 = vunpack.c.h.b16 %v796
      %v1010 = vunpack.c.l.b16 %v797
      %v1011 = vunpack.c.h.b16 %v797
      %v1012 = vunpack.c.l.b16 %v798
      %v1013 = vunpack.c.h.b16 %v798
      %v1014 = vunpack.c.l.b16 %v799
      %v1015 = vunpack.c.h.b16 %v799
      %v1016 = vunpack.c.l.b16 %v800
      %v1017 = vunpack.c.h.b16 %v800
      %v1018 = vunpack.c.l.b16 %v801
      %v1019 = vunpack.c.h.b16 %v801
      %v1020 = vunpack.c.l.b16 %v802
      %v1021 = vunpack.c.h.b16 %v802
      %v1022 = vunpack.c.l.b16 %v803
      %v1023 = vunpack.c.h.b16 %v803
      %v1024 = vunpack.c.l.b16 %v804
      %v1025 = vunpack.c.h.b16 %v804
      %v1026 = vunpack.c.l.b16 %v805
      %v1027 = vunpack.c.h.b16 %v805
      %v1028 = vunpack.c.l.b16 %v806
      %v1029 = vunpack.c.h.b16 %v806
      %v1030 = vunpack.c.l.b16 %v807
      %v1031 = vunpack.c.h.b16 %v807
      %v1032 = vunpack.c.l.b16 %v808
      %v1033 = vunpack.c.h.b16 %v808
      %v1034 = vunpack.c.l.b16 %v809
      %v1035 = vunpack.c.h.b16 %v809
      %v1036 = vunpack.c.l.b16 %v810
      %v1037 = vunpack.c.h.b16 %v810
      %v1038 = vunpack.c.l.b16 %v811
      %v1039 = vunpack.c.h.b16 %v811
      %v1040 = vunpack.c.l.b16 %v812
      %v1041 = vunpack.c.h.b16 %v812
      %v1042 = vunpack.c.l.b16 %v813
      %v1043 = vunpack.c.h.b16 %v813
      %v1044 = vunpack.c.l.b16 %v814
      %v1045 = vunpack.c.h.b16 %v814
      %v1046 = vpack.c.b16 %v990, %v982
      %v1047 = vpack.c.b16 %v991, %v983
      %v1048 = vpack.c.b16 %v992, %v984
      %v1049 = vpack.c.b16 %v993, %v985
      %v1050 = vpack.c.b16 %v994, %v986
      %v1051 = vpack.c.b16 %v995, %v987
      %v1052 = vpack.c.b16 %v996, %v988
      %v1053 = vpack.c.b16 %v997, %v989
      %v1054 = vpack.c.b16 %v1006, %v998
      %v1055 = vpack.c.b16 %v1007, %v999
      %v1056 = vpack.c.b16 %v1008, %v1000
      %v1057 = vpack.c.b16 %v1009, %v1001
      %v1058 = vpack.c.b16 %v1010, %v1002
      %v1059 = vpack.c.b16 %v1011, %v1003
      %v1060 = vpack.c.b16 %v1012, %v1004
      %v1061 = vpack.c.b16 %v1013, %v1005
      %v1062 = vpack.c.b16 %v1022, %v1014
      %v1063 = vpack.c.b16 %v1023, %v1015
      %v1064 = vpack.c.b16 %v1024, %v1016
      %v1065 = vpack.c.b16 %v1025, %v1017
      %v1066 = vpack.c.b16 %v1026, %v1018
      %v1067 = vpack.c.b16 %v1027, %v1019
      %v1068 = vpack.c.b16 %v1028, %v1020
      %v1069 = vpack.c.b16 %v1029, %v1021
      %v1070 = vpack.c.b16 %v1038, %v1030
      %v1071 = vpack.c.b16 %v1039, %v1031
      %v1072 = vpack.c.b16 %v1040, %v1032
      %v1073 = vpack.c.b16 %v1041, %v1033
      %v1074 = vpack.c.b16 %v1042, %v1034
      %v1075 = vpack.c.b16 %v1043, %v1035
      %v1076 = vpack.c.b16 %v1044, %v1036
      %v1077 = vpack.c.b16 %v1045, %v1037
      %v1238 = vunpack.c.l.b16 %v815
      %v1239 = vunpack.c.l.b16 %v816
      %v1240 = vunpack.c.l.b16 %v817
      %v1241 = vunpack.c.l.b16 %v818
      %v1242 = vunpack.c.l.b16 %v819
      %v1243 = vunpack.c.l.b16 %v820
      %v1244 = vunpack.c.l.b16 %v821
      %v1245 = vunpack.c.l.b16 %v822
      %v1246 = vunpack.c.l.b16 %v823
      %v1247 = vunpack.c.l.b16 %v824
      %v1248 = vunpack.c.l.b16 %v825
      %v1249 = vunpack.c.l.b16 %v826
      %v1250 = vunpack.c.l.b16 %v827
      %v1251 = vunpack.c.l.b16 %v828
      %v1252 = vunpack.c.l.b16 %v829
      %v1253 = vunpack.c.l.b16 %v830
      %v1254 = vunpack.c.l.b16 %v831
      %v1255 = vunpack.c.l.b16 %v832
      %v1256 = vunpack.c.l.b16 %v833
      %v1257 = vunpack.c.l.b16 %v834
      %v1258 = vunpack.c.l.b16 %v835
      %v1259 = vunpack.c.l.b16 %v836
      %v1260 = vunpack.c.l.b16 %v837
      %v1261 = vunpack.c.l.b16 %v838
      %v1262 = vunpack.c.l.b16 %v839
      %v1263 = vunpack.c.l.b16 %v840
      %v1264 = vunpack.c.l.b16 %v841
      %v1265 = vunpack.c.l.b16 %v842
      %v1266 = vunpack.c.l.b16 %v843
      %v1267 = vunpack.c.l.b16 %v844
      %v1268 = vunpack.c.l.b16 %v845
      %v1269 = vunpack.c.l.b16 %v846
      %v1270 = vunpack.c.l.b16 %v847
      %v1271 = vunpack.c.l.b16 %v848
      %v1272 = vunpack.c.l.b16 %v849
      %v1273 = vunpack.c.l.b16 %v850
      %v1274 = vunpack.c.l.b16 %v851
      %v1275 = vunpack.c.l.b16 %v852
      %v1276 = vunpack.c.l.b16 %v853
      %v1277 = vunpack.c.l.b16 %v854
      %v1278 = vunpack.c.l.b16 %v855
      %v1279 = vunpack.c.l.b16 %v856
      %v1280 = vunpack.c.l.b16 %v857
      %v1281 = vunpack.c.l.b16 %v858
      %v1282 = vunpack.c.l.b16 %v859
      %v1283 = vunpack.c.l.b16 %v860
      %v1284 = vunpack.c.l.b16 %v861
      %v1285 = vunpack.c.l.b16 %v862
      %v1286 = vunpack.c.l.b16 %v863
      %v1287 = vunpack.c.l.b16 %v864
      %v1288 = vunpack.c.l.b16 %v865
      %v1289 = vunpack.c.l.b16 %v866
      %v1290 = vunpack.c.l.b16 %v867
      %v1291 = vunpack.c.l.b16 %v868
      %v1292 = vunpack.c.l.b16 %v869
      %v1293 = vunpack.c.l.b16 %v870
      %v1294 = vunpack.c.l.b16 %v871
      %v1295 = vunpack.c.l.b16 %v872
      %v1296 = vunpack.c.l.b16 %v873
      %v1297 = vunpack.c.l.b16 %v874
      %v1298 = vunpack.c.l.b16 %v875
      %v1299 = vunpack.c.l.b16 %v876
      %v1300 = vunpack.c.l.b16 %v877
      %v1301 = vunpack.c.l.b16 %v878
      %v1302 = vunpack.c.l.b16 %v879
      %v1303 = vunpack.c.l.b16 %v880
      %v1304 = vunpack.c.l.b16 %v881
      %v1305 = vunpack.c.l.b16 %v882
      %v1306 = vunpack.c.l.b16 %v883
      %v1307 = vunpack.c.l.b16 %v884
      %v1308 = vunpack.c.l.b16 %v885
      %v1309 = vunpack.c.l.b16 %v886
      %v1310 = vunpack.c.l.b16 %v887
      %v1311 = vunpack.c.l.b16 %v888
      %v1312 = vunpack.c.l.b16 %v889
      %v1313 = vunpack.c.l.b16 %v890
      %v1314 = vunpack.c.l.b16 %v891
      %v1315 = vunpack.c.l.b16 %v892
      %v1316 = vunpack.c.l.b16 %v893
      %v1317 = vunpack.c.l.b16 %v894
      %v1318 = vunpack.c.l.b16 %v895
      %v1319 = vunpack.c.l.b16 %v896
      %v1320 = vunpack.c.l.b16 %v897
      %v1321 = vunpack.c.l.b16 %v898
      %v1322 = vunpack.c.l.b16 %v899
      %v1323 = vunpack.c.l.b16 %v900
      %v1324 = vunpack.c.l.b16 %v901
      %v1325 = vunpack.c.l.b16 %v902
      %v1326 = vunpack.c.l.b16 %v903
      %v1327 = vunpack.c.l.b16 %v904
      %v1328 = vunpack.c.l.b16 %v905
      %v1329 = vunpack.c.l.b16 %v906
      %v1330 = vunpack.c.l.b16 %v907
      %v1331 = vunpack.c.l.b16 %v908
      %v1332 = vunpack.c.l.b16 %v909
      %v1333 = vunpack.c.l.b16 %v910
      %v1334 = vunpack.c.l.b16 %v911
      %v1335 = vunpack.c.l.b16 %v912
      %v1336 = vunpack.c.l.b16 %v913
      %v1337 = vunpack.c.l.b16 %v914
      %v1338 = vunpack.c.l.b16 %v915
      %v1339 = vunpack.c.l.b16 %v916
      %v1340 = vunpack.c.l.b16 %v917
      %v1341 = vunpack.c.l.b16 %v918
      %v1342 = vunpack.c.l.b16 %v919
      %v1343 = vunpack.c.l.b16 %v920
      %v1344 = vunpack.c.l.b16 %v921
      %v1345 = vunpack.c.l.b16 %v922
      %v1346 = vunpack.c.l.b16 %v923
      %v1347 = vunpack.c.l.b16 %v924
      %v1348 = vunpack.c.l.b16 %v925
      %v1349 = vunpack.c.l.b16 %v926
      %v1350 = vunpack.c.l.b16 %v927
      %v1351 = vunpack.c.l.b16 %v928
      %v1352 = vunpack.c.l.b16 %v929
      %v1353 = vunpack.c.l.b16 %v930
      %v1354 = vunpack.c.l.b16 %v931
      %v1355 = vunpack.c.l.b16 %v932
      %v1356 = vunpack.c.l.b16 %v933
      %v1357 = vunpack.c.l.b16 %v934
      %v1358 = vunpack.c.l.b16 %v935
      %v1359 = vunpack.c.l.b16 %v936
      %v1360 = vunpack.c.l.b16 %v937
      %v1361 = vunpack.c.l.b16 %v938
      %v1362 = vunpack.c.l.b16 %v939
      %v1363 = vunpack.c.l.b16 %v940
      %v1364 = vunpack.c.l.b16 %v941
      %v1365 = vunpack.c.l.b16 %v942
      %v1366 = vpack.c.b16 %v1239, %v1238
      %v1367 = vpack.c.b16 %v1241, %v1240
      %v1368 = vpack.c.b16 %v1243, %v1242
      %v1369 = vpack.c.b16 %v1245, %v1244
      %v1370 = vpack.c.b16 %v1247, %v1246
      %v1371 = vpack.c.b16 %v1249, %v1248
      %v1372 = vpack.c.b16 %v1251, %v1250
      %v1373 = vpack.c.b16 %v1253, %v1252
      %v1374 = vpack.c.b16 %v1255, %v1254
      %v1375 = vpack.c.b16 %v1257, %v1256
      %v1376 = vpack.c.b16 %v1259, %v1258
      %v1377 = vpack.c.b16 %v1261, %v1260
      %v1378 = vpack.c.b16 %v1263, %v1262
      %v1379 = vpack.c.b16 %v1265, %v1264
      %v1380 = vpack.c.b16 %v1267, %v1266
      %v1381 = vpack.c.b16 %v1269, %v1268
      %v1382 = vpack.c.b16 %v1271, %v1270
      %v1383 = vpack.c.b16 %v1273, %v1272
      %v1384 = vpack.c.b16 %v1275, %v1274
      %v1385 = vpack.c.b16 %v1277, %v1276
      %v1386 = vpack.c.b16 %v1279, %v1278
      %v1387 = vpack.c.b16 %v1281, %v1280
      %v1388 = vpack.c.b16 %v1283, %v1282
      %v1389 = vpack.c.b16 %v1285, %v1284
      %v1390 = vpack.c.b16 %v1287, %v1286
      %v1391 = vpack.c.b16 %v1289, %v1288
      %v1392 = vpack.c.b16 %v1291, %v1290
      %v1393 = vpack.c.b16 %v1293, %v1292
      %v1394 = vpack.c.b16 %v1295, %v1294
      %v1395 = vpack.c.b16 %v1297, %v1296
      %v1396 = vpack.c.b16 %v1299, %v1298
      %v1397 = vpack.c.b16 %v1301, %v1300
      %v1398 = vpack.c.b16 %v1303, %v1302
      %v1399 = vpack.c.b16 %v1305, %v1304
      %v1400 = vpack.c.b16 %v1307, %v1306
      %v1401 = vpack.c.b16 %v1309, %v1308
      %v1402 = vpack.c.b16 %v1311, %v1310
      %v1403 = vpack.c.b16 %v1313, %v1312
      %v1404 = vpack.c.b16 %v1315, %v1314
      %v1405 = vpack.c.b16 %v1317, %v1316
      %v1406 = vpack.c.b16 %v1319, %v1318
      %v1407 = vpack.c.b16 %v1321, %v1320
      %v1408 = vpack.c.b16 %v1323, %v1322
      %v1409 = vpack.c.b16 %v1325, %v1324
      %v1410 = vpack.c.b16 %v1327, %v1326
      %v1411 = vpack.c.b16 %v1329, %v1328
      %v1412 = vpack.c.b16 %v1331, %v1330
      %v1413 = vpack.c.b16 %v1333, %v1332
      %v1414 = vpack.c.b16 %v1335, %v1334
      %v1415 = vpack.c.b16 %v1337, %v1336
      %v1416 = vpack.c.b16 %v1339, %v1338
      %v1417 = vpack.c.b16 %v1341, %v1340
      %v1418 = vpack.c.b16 %v1343, %v1342
      %v1419 = vpack.c.b16 %v1345, %v1344
      %v1420 = vpack.c.b16 %v1347, %v1346
      %v1421 = vpack.c.b16 %v1349, %v1348
      %v1422 = vpack.c.b16 %v1351, %v1350
      %v1423 = vpack.c.b16 %v1353, %v1352
      %v1424 = vpack.c.b16 %v1355, %v1354
      %v1425 = vpack.c.b16 %v1357, %v1356
      %v1426 = vpack.c.b16 %v1359, %v1358
      %v1427 = vpack.c.b16 %v1361, %v1360
      %v1428 = vpack.c.b16 %v1363, %v1362
      %v1429 = vpack.c.b16 %v1365, %v1364
      %1494 = vmatprep.subr.bf16.mxu0 0
      %1495 = vmatpush1.bf16.msra.mxu0 %v1373
      %1496 = vmatprep.subr.bf16.mxu0 0
      %1497 = vmatpush1.bf16.msra.mxu0 %v1372
      %1498 = vmatprep.subr.bf16.mxu0 0
      %1499 = vmatpush1.bf16.msra.mxu0 %v1371
      %1500 = vmatprep.subr.bf16.mxu0 0
      %1501 = vmatpush1.bf16.msra.mxu0 %v1370
      %1502 = vmatprep.subr.bf16.mxu0 0
      %1503 = vmatpush1.bf16.msra.mxu0 %v1369
      %1504 = vmatprep.subr.bf16.mxu0 0
      %1505 = vmatpush1.bf16.msra.mxu0 %v1368
      %1506 = vmatprep.subr.bf16.mxu0 0
      %1507 = vmatpush1.bf16.msra.mxu0 %v1367
      %1508 = vmatprep.subr.bf16.mxu0 0
      %1509 = vmatpush1.bf16.msra.mxu0 %v1366
      %1510 = vmatprep.subr.bf16.mxu0 0
      %1511 = vmatpush2.bf16.msra.mxu0 %v1381
      %1512 = vmatprep.subr.bf16.mxu0 0
      %1513 = vmatpush2.bf16.msra.mxu0 %v1380
      %1514 = vmatprep.subr.bf16.mxu0 0
      %1515 = vmatpush2.bf16.msra.mxu0 %v1379
      %1516 = vmatprep.subr.bf16.mxu0 0
      %1517 = vmatpush2.bf16.msra.mxu0 %v1378
      %1518 = vmatprep.subr.bf16.mxu0 0
      %1519 = vmatpush2.bf16.msra.mxu0 %v1377
      %1520 = vmatprep.subr.bf16.mxu0 0
      %1521 = vmatpush2.bf16.msra.mxu0 %v1376
      %1522 = vmatprep.subr.bf16.mxu0 0
      %1523 = vmatpush2.bf16.msra.mxu0 %v1375
      %1524 = vmatprep.subr.bf16.mxu0 0
      %1525 = vmatpush2.bf16.msra.mxu0 %v1374
      %1526 = vmatprep.mubr.bf16.mxu0 %v1047
      %1527 = vmatmul.mubr.bf16.gmra.mxu0 %v1046
      %v1528 = vpop.f32.mrf.mxu0
      %v1529 = vadd.f32 %v948, %v1528
      %v1530 = vpop.f32.mrf.mxu0
      %v1531 = vpop.f32.mrf.mxu0
      %v1532 = vadd.f32 %v948, %v1531
      %v1533 = vpop.f32.mrf.mxu0
      %1534 = vmatprep.mubr.bf16.mxu0 %v1055
      %1535 = vmatmul.mubr.bf16.gmra.mxu0 %v1054
      %v1536 = vpop.f32.mrf.mxu0
      %v1537 = vadd.f32 %v948, %v1536
      %v1538 = vpop.f32.mrf.mxu0
      %v1539 = vpop.f32.mrf.mxu0
      %v1540 = vadd.f32 %v948, %v1539
      %v1541 = vpop.f32.mrf.mxu0
      %1542 = vmatprep.mubr.bf16.mxu0 %v1063
      %1543 = vmatmul.mubr.bf16.gmra.mxu0 %v1062
      %v1544 = vpop.f32.mrf.mxu0
      %v1545 = vadd.f32 %v948, %v1544
      %v1546 = vpop.f32.mrf.mxu0
      %v1547 = vpop.f32.mrf.mxu0
      %v1548 = vadd.f32 %v948, %v1547
      %v1549 = vpop.f32.mrf.mxu0
      %1550 = vmatprep.mubr.bf16.mxu0 %v1071
      %1551 = vmatmul.mubr.bf16.gmra.mxu0 %v1070
      %v1552 = vpop.f32.mrf.mxu0
      %v1553 = vadd.f32 %v948, %v1552
      %v1554 = vpop.f32.mrf.mxu0
      %v1555 = vpop.f32.mrf.mxu0
      %v1556 = vadd.f32 %v948, %v1555
      %v1557 = vpop.f32.mrf.mxu0
      %1558 = vdwg.mxu0
      %1559 = vmatprep.subr.bf16.mxu0 0
      %1560 = vmatpush1.bf16.msra.mxu0 %v1389
      %1561 = vmatprep.subr.bf16.mxu0 0
      %1562 = vmatpush1.bf16.msra.mxu0 %v1388
      %1563 = vmatprep.subr.bf16.mxu0 0
      %1564 = vmatpush1.bf16.msra.mxu0 %v1387
      %1565 = vmatprep.subr.bf16.mxu0 0
      %1566 = vmatpush1.bf16.msra.mxu0 %v1386
      %1567 = vmatprep.subr.bf16.mxu0 0
      %1568 = vmatpush1.bf16.msra.mxu0 %v1385
      %1569 = vmatprep.subr.bf16.mxu0 0
      %1570 = vmatpush1.bf16.msra.mxu0 %v1384
      %1571 = vmatprep.subr.bf16.mxu0 0
      %1572 = vmatpush1.bf16.msra.mxu0 %v1383
      %1573 = vmatprep.subr.bf16.mxu0 0
      %1574 = vmatpush1.bf16.msra.mxu0 %v1382
      %1575 = vmatprep.subr.bf16.mxu0 0
      %1576 = vmatpush2.bf16.msra.mxu0 %v1397
      %1577 = vmatprep.subr.bf16.mxu0 0
      %1578 = vmatpush2.bf16.msra.mxu0 %v1396
      %1579 = vmatprep.subr.bf16.mxu0 0
      %1580 = vmatpush2.bf16.msra.mxu0 %v1395
      %1581 = vmatprep.subr.bf16.mxu0 0
      %1582 = vmatpush2.bf16.msra.mxu0 %v1394
      %1583 = vmatprep.subr.bf16.mxu0 0
      %1584 = vmatpush2.bf16.msra.mxu0 %v1393
      %1585 = vmatprep.subr.bf16.mxu0 0
      %1586 = vmatpush2.bf16.msra.mxu0 %v1392
      %1587 = vmatprep.subr.bf16.mxu0 0
      %1588 = vmatpush2.bf16.msra.mxu0 %v1391
      %1589 = vmatprep.subr.bf16.mxu0 0
      %1590 = vmatpush2.bf16.msra.mxu0 %v1390
      %1591 = vmatprep.mubr.bf16.mxu0 %v1049
      %1592 = vmatmul.mubr.bf16.gmra.mxu0 %v1048
      %v1593 = vpop.f32.mrf.mxu0
      %v1594 = vadd.f32 %v1529, %v1593
      %v1595 = vpop.f32.mrf.mxu0
      %v1596 = vpop.f32.mrf.mxu0
      %v1597 = vadd.f32 %v1532, %v1596
      %v1598 = vpop.f32.mrf.mxu0
      %1599 = vmatprep.mubr.bf16.mxu0 %v1057
      %1600 = vmatmul.mubr.bf16.gmra.mxu0 %v1056
      %v1601 = vpop.f32.mrf.mxu0
      %v1602 = vadd.f32 %v1537, %v1601
      %v1603 = vpop.f32.mrf.mxu0
      %v1604 = vpop.f32.mrf.mxu0
      %v1605 = vadd.f32 %v1540, %v1604
      %v1606 = vpop.f32.mrf.mxu0
      %1607 = vmatprep.mubr.bf16.mxu0 %v1065
      %1608 = vmatmul.mubr.bf16.gmra.mxu0 %v1064
      %v1609 = vpop.f32.mrf.mxu0
      %v1610 = vadd.f32 %v1545, %v1609
      %v1611 = vpop.f32.mrf.mxu0
      %v1612 = vpop.f32.mrf.mxu0
      %v1613 = vadd.f32 %v1548, %v1612
      %v1614 = vpop.f32.mrf.mxu0
      %1615 = vmatprep.mubr.bf16.mxu0 %v1073
      %1616 = vmatmul.mubr.bf16.gmra.mxu0 %v1072
      %v1617 = vpop.f32.mrf.mxu0
      %v1618 = vadd.f32 %v1553, %v1617
      %v1619 = vpop.f32.mrf.mxu0
      %v1620 = vpop.f32.mrf.mxu0
      %v1621 = vadd.f32 %v1556, %v1620
      %v1622 = vpop.f32.mrf.mxu0
      %1623 = vdwg.mxu0
      %1624 = vmatprep.subr.bf16.mxu0 0
      %1625 = vmatpush1.bf16.msra.mxu0 %v1405
      %1626 = vmatprep.subr.bf16.mxu0 0
      %1627 = vmatpush1.bf16.msra.mxu0 %v1404
      %1628 = vmatprep.subr.bf16.mxu0 0
      %1629 = vmatpush1.bf16.msra.mxu0 %v1403
      %1630 = vmatprep.subr.bf16.mxu0 0
      %1631 = vmatpush1.bf16.msra.mxu0 %v1402
      %1632 = vmatprep.subr.bf16.mxu0 0
      %1633 = vmatpush1.bf16.msra.mxu0 %v1401
      %1634 = vmatprep.subr.bf16.mxu0 0
      %1635 = vmatpush1.bf16.msra.mxu0 %v1400
      %1636 = vmatprep.subr.bf16.mxu0 0
      %1637 = vmatpush1.bf16.msra.mxu0 %v1399
      %1638 = vmatprep.subr.bf16.mxu0 0
      %1639 = vmatpush1.bf16.msra.mxu0 %v1398
      %1640 = vmatprep.subr.bf16.mxu0 0
      %1641 = vmatpush2.bf16.msra.mxu0 %v1413
      %1642 = vmatprep.subr.bf16.mxu0 0
      %1643 = vmatpush2.bf16.msra.mxu0 %v1412
      %1644 = vmatprep.subr.bf16.mxu0 0
      %1645 = vmatpush2.bf16.msra.mxu0 %v1411
      %1646 = vmatprep.subr.bf16.mxu0 0
      %1647 = vmatpush2.bf16.msra.mxu0 %v1410
      %1648 = vmatprep.subr.bf16.mxu0 0
      %1649 = vmatpush2.bf16.msra.mxu0 %v1409
      %1650 = vmatprep.subr.bf16.mxu0 0
      %1651 = vmatpush2.bf16.msra.mxu0 %v1408
      %1652 = vmatprep.subr.bf16.mxu0 0
      %1653 = vmatpush2.bf16.msra.mxu0 %v1407
      %1654 = vmatprep.subr.bf16.mxu0 0
      %1655 = vmatpush2.bf16.msra.mxu0 %v1406
      %1656 = vmatprep.mubr.bf16.mxu0 %v1051
      %1657 = vmatmul.mubr.bf16.gmra.mxu0 %v1050
      %v1658 = vpop.f32.mrf.mxu0
      %v1659 = vadd.f32 %v1594, %v1658
      %v1660 = vpop.f32.mrf.mxu0
      %v1661 = vpop.f32.mrf.mxu0
      %v1662 = vadd.f32 %v1597, %v1661
      %v1663 = vpop.f32.mrf.mxu0
      %1664 = vmatprep.mubr.bf16.mxu0 %v1059
      %1665 = vmatmul.mubr.bf16.gmra.mxu0 %v1058
      %v1666 = vpop.f32.mrf.mxu0
      %v1667 = vadd.f32 %v1602, %v1666
      %v1668 = vpop.f32.mrf.mxu0
      %v1669 = vpop.f32.mrf.mxu0
      %v1670 = vadd.f32 %v1605, %v1669
      %v1671 = vpop.f32.mrf.mxu0
      %1672 = vmatprep.mubr.bf16.mxu0 %v1067
      %1673 = vmatmul.mubr.bf16.gmra.mxu0 %v1066
      %v1674 = vpop.f32.mrf.mxu0
      %v1675 = vadd.f32 %v1610, %v1674
      %v1676 = vpop.f32.mrf.mxu0
      %v1677 = vpop.f32.mrf.mxu0
      %v1678 = vadd.f32 %v1613, %v1677
      %v1679 = vpop.f32.mrf.mxu0
      %1680 = vmatprep.mubr.bf16.mxu0 %v1075
      %1681 = vmatmul.mubr.bf16.gmra.mxu0 %v1074
      %v1682 = vpop.f32.mrf.mxu0
      %v1683 = vadd.f32 %v1618, %v1682
      %v1684 = vpop.f32.mrf.mxu0
      %v1685 = vpop.f32.mrf.mxu0
      %v1686 = vadd.f32 %v1621, %v1685
      %v1687 = vpop.f32.mrf.mxu0
      %1688 = vdwg.mxu0
      %1689 = vmatprep.subr.bf16.mxu0 0
      %1690 = vmatpush1.bf16.msra.mxu0 %v1421
      %1691 = vmatprep.subr.bf16.mxu0 0
      %1692 = vmatpush1.bf16.msra.mxu0 %v1420
      %1693 = vmatprep.subr.bf16.mxu0 0
      %1694 = vmatpush1.bf16.msra.mxu0 %v1419
      %1695 = vmatprep.subr.bf16.mxu0 0
      %1696 = vmatpush1.bf16.msra.mxu0 %v1418
      %1697 = vmatprep.subr.bf16.mxu0 0
      %1698 = vmatpush1.bf16.msra.mxu0 %v1417
      %1699 = vmatprep.subr.bf16.mxu0 0
      %1700 = vmatpush1.bf16.msra.mxu0 %v1416
      %1701 = vmatprep.subr.bf16.mxu0 0
      %1702 = vmatpush1.bf16.msra.mxu0 %v1415
      %1703 = vmatprep.subr.bf16.mxu0 0
      %1704 = vmatpush1.bf16.msra.mxu0 %v1414
      %1705 = vmatprep.subr.bf16.mxu0 0
      %1706 = vmatpush2.bf16.msra.mxu0 %v1429
      %1707 = vmatprep.subr.bf16.mxu0 0
      %1708 = vmatpush2.bf16.msra.mxu0 %v1428
      %1709 = vmatprep.subr.bf16.mxu0 0
      %1710 = vmatpush2.bf16.msra.mxu0 %v1427
      %1711 = vmatprep.subr.bf16.mxu0 0
      %1712 = vmatpush2.bf16.msra.mxu0 %v1426
      %1713 = vmatprep.subr.bf16.mxu0 0
      %1714 = vmatpush2.bf16.msra.mxu0 %v1425
      %1715 = vmatprep.subr.bf16.mxu0 0
      %1716 = vmatpush2.bf16.msra.mxu0 %v1424
      %1717 = vmatprep.subr.bf16.mxu0 0
      %1718 = vmatpush2.bf16.msra.mxu0 %v1423
      %1719 = vmatprep.subr.bf16.mxu0 0
      %1720 = vmatpush2.bf16.msra.mxu0 %v1422
      %1721 = vmatprep.mubr.bf16.mxu0 %v1053
      %1722 = vmatmul.mubr.bf16.gmra.mxu0 %v1052
      %v1723 = vpop.f32.mrf.mxu0
      %v1724 = vadd.f32 %v1659, %v1723
      %v1725 = vpop.f32.mrf.mxu0
      %v1726 = vpop.f32.mrf.mxu0
      %v1727 = vadd.f32 %v1662, %v1726
      %v1728 = vpop.f32.mrf.mxu0
      %1729 = vmatprep.mubr.bf16.mxu0 %v1061
      %1730 = vmatmul.mubr.bf16.gmra.mxu0 %v1060
      %v1731 = vpop.f32.mrf.mxu0
      %v1732 = vadd.f32 %v1667, %v1731
      %v1733 = vpop.f32.mrf.mxu0
      %v1734 = vpop.f32.mrf.mxu0
      %v1735 = vadd.f32 %v1670, %v1734
      %v1736 = vpop.f32.mrf.mxu0
      %1737 = vmatprep.mubr.bf16.mxu0 %v1069
      %1738 = vmatmul.mubr.bf16.gmra.mxu0 %v1068
      %v1739 = vpop.f32.mrf.mxu0
      %v1740 = vadd.f32 %v1675, %v1739
      %v1741 = vpop.f32.mrf.mxu0
      %v1742 = vpop.f32.mrf.mxu0
      %v1743 = vadd.f32 %v1678, %v1742
      %v1744 = vpop.f32.mrf.mxu0
      %1745 = vmatprep.mubr.bf16.mxu0 %v1077
      %1746 = vmatmul.mubr.bf16.gmra.mxu0 %v1076
      %v1747 = vpop.f32.mrf.mxu0
      %v1748 = vadd.f32 %v1683, %v1747
      %v1749 = vpop.f32.mrf.mxu0
      %v1750 = vpop.f32.mrf.mxu0
      %v1751 = vadd.f32 %v1686, %v1750
      %v1752 = vpop.f32.mrf.mxu0
      %1753 = vdwg.mxu0
      %v1754 = vld [vmem:[%s602] sm:$0xff]
      %v1755 = vld [vmem:[%s602 + $0x8] sm:$0xff]
      %v1756 = vld [vmem:[%s602 + $0x10] sm:$0xff]
      %v1757 = vld [vmem:[%s602 + $0x18] sm:$0xff]
      %v1758 = vld [vmem:[%s602 + $0x20] sm:$0xff]
      %v1759 = vld [vmem:[%s602 + $0x28] sm:$0xff]
      %v1760 = vld [vmem:[%s602 + $0x30] sm:$0xff]
      %v1761 = vld [vmem:[%s602 + $0x38] sm:$0xff]
      %v1762 = vld [vmem:[%s602 + $0x40] sm:$0xff]
      %v1763 = vld [vmem:[%s602 + $0x48] sm:$0xff]
      %v1764 = vld [vmem:[%s602 + $0x50] sm:$0xff]
      %v1765 = vld [vmem:[%s602 + $0x58] sm:$0xff]
      %v1766 = vld [vmem:[%s602 + $0x60] sm:$0xff]
      %v1767 = vld [vmem:[%s602 + $0x68] sm:$0xff]
      %v1768 = vld [vmem:[%s602 + $0x70] sm:$0xff]
      %v1769 = vld [vmem:[%s602 + $0x78] sm:$0xff]
      %v1770 = vld [vmem:[%s7] sm:$0xf]
      %v1771 = vld [vmem:[%s7 + $0x4] sm:$0xf]
      %v1772 = vld [vmem:[%s7 + $0x8] sm:$0xf]
      %v1773 = vld [vmem:[%s7 + $0xc] sm:$0xf]
      %v1774 = vld [vmem:[%s7 + $0x10] sm:$0xf]
      %v1775 = vld [vmem:[%s7 + $0x14] sm:$0xf]
      %v1776 = vld [vmem:[%s7 + $0x18] sm:$0xf]
      %v1777 = vld [vmem:[%s7 + $0x1c] sm:$0xf]
      %v1778 = vld [vmem:[%s7 + $0x20] sm:$0xf]
      %v1779 = vld [vmem:[%s7 + $0x24] sm:$0xf]
      %v1780 = vld [vmem:[%s7 + $0x28] sm:$0xf]
      %v1781 = vld [vmem:[%s7 + $0x2c] sm:$0xf]
      %v1782 = vld [vmem:[%s7 + $0x30] sm:$0xf]
      %v1783 = vld [vmem:[%s7 + $0x34] sm:$0xf]
      %v1784 = vld [vmem:[%s7 + $0x38] sm:$0xf]
      %v1785 = vld [vmem:[%s7 + $0x3c] sm:$0xf]
      %v1786 = vld [vmem:[%s7 + $0x40] sm:$0xf]
      %v1787 = vld [vmem:[%s7 + $0x44] sm:$0xf]
      %v1788 = vld [vmem:[%s7 + $0x48] sm:$0xf]
      %v1789 = vld [vmem:[%s7 + $0x4c] sm:$0xf]
      %v1790 = vld [vmem:[%s7 + $0x50] sm:$0xf]
      %v1791 = vld [vmem:[%s7 + $0x54] sm:$0xf]
      %v1792 = vld [vmem:[%s7 + $0x58] sm:$0xf]
      %v1793 = vld [vmem:[%s7 + $0x5c] sm:$0xf]
      %v1794 = vld [vmem:[%s7 + $0x60] sm:$0xf]
      %v1795 = vld [vmem:[%s7 + $0x64] sm:$0xf]
      %v1796 = vld [vmem:[%s7 + $0x68] sm:$0xf]
      %v1797 = vld [vmem:[%s7 + $0x6c] sm:$0xf]
      %v1798 = vld [vmem:[%s7 + $0x70] sm:$0xf]
      %v1799 = vld [vmem:[%s7 + $0x74] sm:$0xf]
      %v1800 = vld [vmem:[%s7 + $0x78] sm:$0xf]
      %v1801 = vld [vmem:[%s7 + $0x7c] sm:$0xf]
      %v1802 = vld [vmem:[%s7 + $0x80] sm:$0xf]
      %v1803 = vld [vmem:[%s7 + $0x84] sm:$0xf]
      %v1804 = vld [vmem:[%s7 + $0x88] sm:$0xf]
      %v1805 = vld [vmem:[%s7 + $0x8c] sm:$0xf]
      %v1806 = vld [vmem:[%s7 + $0x90] sm:$0xf]
      %v1807 = vld [vmem:[%s7 + $0x94] sm:$0xf]
      %v1808 = vld [vmem:[%s7 + $0x98] sm:$0xf]
      %v1809 = vld [vmem:[%s7 + $0x9c] sm:$0xf]
      %v1810 = vld [vmem:[%s7 + $0xa0] sm:$0xf]
      %v1811 = vld [vmem:[%s7 + $0xa4] sm:$0xf]
      %v1812 = vld [vmem:[%s7 + $0xa8] sm:$0xf]
      %v1813 = vld [vmem:[%s7 + $0xac] sm:$0xf]
      %v1814 = vld [vmem:[%s7 + $0xb0] sm:$0xf]
      %v1815 = vld [vmem:[%s7 + $0xb4] sm:$0xf]
      %v1816 = vld [vmem:[%s7 + $0xb8] sm:$0xf]
      %v1817 = vld [vmem:[%s7 + $0xbc] sm:$0xf]
      %v1818 = vld [vmem:[%s7 + $0xc0] sm:$0xf]
      %v1819 = vld [vmem:[%s7 + $0xc4] sm:$0xf]
      %v1820 = vld [vmem:[%s7 + $0xc8] sm:$0xf]
      %v1821 = vld [vmem:[%s7 + $0xcc] sm:$0xf]
      %v1822 = vld [vmem:[%s7 + $0xd0] sm:$0xf]
      %v1823 = vld [vmem:[%s7 + $0xd4] sm:$0xf]
      %v1824 = vld [vmem:[%s7 + $0xd8] sm:$0xf]
      %v1825 = vld [vmem:[%s7 + $0xdc] sm:$0xf]
      %v1826 = vld [vmem:[%s7 + $0xe0] sm:$0xf]
      %v1827 = vld [vmem:[%s7 + $0xe4] sm:$0xf]
      %v1828 = vld [vmem:[%s7 + $0xe8] sm:$0xf]
      %v1829 = vld [vmem:[%s7 + $0xec] sm:$0xf]
      %v1830 = vld [vmem:[%s7 + $0xf0] sm:$0xf]
      %v1831 = vld [vmem:[%s7 + $0xf4] sm:$0xf]
      %v1832 = vld [vmem:[%s7 + $0xf8] sm:$0xf]
      %v1833 = vld [vmem:[%s7 + $0xfc] sm:$0xf]
      %v1834 = vld [vmem:[%s8] sm:$0x1]
      %v1836 = vlaneseq
      %v1837 = vshrl.u32 %v1836, 7
      %v1838 = vsub.s32 0, %v1837
      %v1839 = vrot.slane %v1834, %v1838
      %v1857 = vunpack.c.l.b16 %v1754
      %v1858 = vunpack.c.h.b16 %v1754
      %v1859 = vunpack.c.l.b16 %v1755
      %v1860 = vunpack.c.h.b16 %v1755
      %v1861 = vunpack.c.l.b16 %v1756
      %v1862 = vunpack.c.h.b16 %v1756
      %v1863 = vunpack.c.l.b16 %v1757
      %v1864 = vunpack.c.h.b16 %v1757
      %v1865 = vunpack.c.l.b16 %v1758
      %v1866 = vunpack.c.h.b16 %v1758
      %v1867 = vunpack.c.l.b16 %v1759
      %v1868 = vunpack.c.h.b16 %v1759
      %v1869 = vunpack.c.l.b16 %v1760
      %v1870 = vunpack.c.h.b16 %v1760
      %v1871 = vunpack.c.l.b16 %v1761
      %v1872 = vunpack.c.h.b16 %v1761
      %v1873 = vunpack.c.l.b16 %v1762
      %v1874 = vunpack.c.h.b16 %v1762
      %v1875 = vunpack.c.l.b16 %v1763
      %v1876 = vunpack.c.h.b16 %v1763
      %v1877 = vunpack.c.l.b16 %v1764
      %v1878 = vunpack.c.h.b16 %v1764
      %v1879 = vunpack.c.l.b16 %v1765
      %v1880 = vunpack.c.h.b16 %v1765
      %v1881 = vunpack.c.l.b16 %v1766
      %v1882 = vunpack.c.h.b16 %v1766
      %v1883 = vunpack.c.l.b16 %v1767
      %v1884 = vunpack.c.h.b16 %v1767
      %v1885 = vunpack.c.l.b16 %v1768
      %v1886 = vunpack.c.h.b16 %v1768
      %v1887 = vunpack.c.l.b16 %v1769
      %v1888 = vunpack.c.h.b16 %v1769
      %v1889 = vpack.c.b16 %v1861, %v1857
      %v1890 = vpack.c.b16 %v1862, %v1858
      %v1891 = vpack.c.b16 %v1863, %v1859
      %v1892 = vpack.c.b16 %v1864, %v1860
      %v1893 = vpack.c.b16 %v1869, %v1865
      %v1894 = vpack.c.b16 %v1870, %v1866
      %v1895 = vpack.c.b16 %v1871, %v1867
      %v1896 = vpack.c.b16 %v1872, %v1868
      %v1897 = vpack.c.b16 %v1877, %v1873
      %v1898 = vpack.c.b16 %v1878, %v1874
      %v1899 = vpack.c.b16 %v1879, %v1875
      %v1900 = vpack.c.b16 %v1880, %v1876
      %v1901 = vpack.c.b16 %v1885, %v1881
      %v1902 = vpack.c.b16 %v1886, %v1882
      %v1903 = vpack.c.b16 %v1887, %v1883
      %v1904 = vpack.c.b16 %v1888, %v1884
      %v1985 = vunpack.c.l.b16 %v1770
      %v1986 = vunpack.c.l.b16 %v1771
      %v1987 = vunpack.c.l.b16 %v1772
      %v1988 = vunpack.c.l.b16 %v1773
      %v1989 = vunpack.c.l.b16 %v1774
      %v1990 = vunpack.c.l.b16 %v1775
      %v1991 = vunpack.c.l.b16 %v1776
      %v1992 = vunpack.c.l.b16 %v1777
      %v1993 = vunpack.c.l.b16 %v1778
      %v1994 = vunpack.c.l.b16 %v1779
      %v1995 = vunpack.c.l.b16 %v1780
      %v1996 = vunpack.c.l.b16 %v1781
      %v1997 = vunpack.c.l.b16 %v1782
      %v1998 = vunpack.c.l.b16 %v1783
      %v1999 = vunpack.c.l.b16 %v1784
      %v2000 = vunpack.c.l.b16 %v1785
      %v2001 = vunpack.c.l.b16 %v1786
      %v2002 = vunpack.c.l.b16 %v1787
      %v2003 = vunpack.c.l.b16 %v1788
      %v2004 = vunpack.c.l.b16 %v1789
      %v2005 = vunpack.c.l.b16 %v1790
      %v2006 = vunpack.c.l.b16 %v1791
      %v2007 = vunpack.c.l.b16 %v1792
      %v2008 = vunpack.c.l.b16 %v1793
      %v2009 = vunpack.c.l.b16 %v1794
      %v2010 = vunpack.c.l.b16 %v1795
      %v2011 = vunpack.c.l.b16 %v1796
      %v2012 = vunpack.c.l.b16 %v1797
      %v2013 = vunpack.c.l.b16 %v1798
      %v2014 = vunpack.c.l.b16 %v1799
      %v2015 = vunpack.c.l.b16 %v1800
      %v2016 = vunpack.c.l.b16 %v1801
      %v2017 = vunpack.c.l.b16 %v1802
      %v2018 = vunpack.c.l.b16 %v1803
      %v2019 = vunpack.c.l.b16 %v1804
      %v2020 = vunpack.c.l.b16 %v1805
      %v2021 = vunpack.c.l.b16 %v1806
      %v2022 = vunpack.c.l.b16 %v1807
      %v2023 = vunpack.c.l.b16 %v1808
      %v2024 = vunpack.c.l.b16 %v1809
      %v2025 = vunpack.c.l.b16 %v1810
      %v2026 = vunpack.c.l.b16 %v1811
      %v2027 = vunpack.c.l.b16 %v1812
      %v2028 = vunpack.c.l.b16 %v1813
      %v2029 = vunpack.c.l.b16 %v1814
      %v2030 = vunpack.c.l.b16 %v1815
      %v2031 = vunpack.c.l.b16 %v1816
      %v2032 = vunpack.c.l.b16 %v1817
      %v2033 = vunpack.c.l.b16 %v1818
      %v2034 = vunpack.c.l.b16 %v1819
      %v2035 = vunpack.c.l.b16 %v1820
      %v2036 = vunpack.c.l.b16 %v1821
      %v2037 = vunpack.c.l.b16 %v1822
      %v2038 = vunpack.c.l.b16 %v1823
      %v2039 = vunpack.c.l.b16 %v1824
      %v2040 = vunpack.c.l.b16 %v1825
      %v2041 = vunpack.c.l.b16 %v1826
      %v2042 = vunpack.c.l.b16 %v1827
      %v2043 = vunpack.c.l.b16 %v1828
      %v2044 = vunpack.c.l.b16 %v1829
      %v2045 = vunpack.c.l.b16 %v1830
      %v2046 = vunpack.c.l.b16 %v1831
      %v2047 = vunpack.c.l.b16 %v1832
      %v2048 = vunpack.c.l.b16 %v1833
      %v2049 = vpack.c.b16 %v1986, %v1985
      %v2050 = vpack.c.b16 %v1988, %v1987
      %v2051 = vpack.c.b16 %v1990, %v1989
      %v2052 = vpack.c.b16 %v1992, %v1991
      %v2053 = vpack.c.b16 %v1994, %v1993
      %v2054 = vpack.c.b16 %v1996, %v1995
      %v2055 = vpack.c.b16 %v1998, %v1997
      %v2056 = vpack.c.b16 %v2000, %v1999
      %v2057 = vpack.c.b16 %v2002, %v2001
      %v2058 = vpack.c.b16 %v2004, %v2003
      %v2059 = vpack.c.b16 %v2006, %v2005
      %v2060 = vpack.c.b16 %v2008, %v2007
      %v2061 = vpack.c.b16 %v2010, %v2009
      %v2062 = vpack.c.b16 %v2012, %v2011
      %v2063 = vpack.c.b16 %v2014, %v2013
      %v2064 = vpack.c.b16 %v2016, %v2015
      %v2065 = vpack.c.b16 %v2018, %v2017
      %v2066 = vpack.c.b16 %v2020, %v2019
      %v2067 = vpack.c.b16 %v2022, %v2021
      %v2068 = vpack.c.b16 %v2024, %v2023
      %v2069 = vpack.c.b16 %v2026, %v2025
      %v2070 = vpack.c.b16 %v2028, %v2027
      %v2071 = vpack.c.b16 %v2030, %v2029
      %v2072 = vpack.c.b16 %v2032, %v2031
      %v2073 = vpack.c.b16 %v2034, %v2033
      %v2074 = vpack.c.b16 %v2036, %v2035
      %v2075 = vpack.c.b16 %v2038, %v2037
      %v2076 = vpack.c.b16 %v2040, %v2039
      %v2077 = vpack.c.b16 %v2042, %v2041
      %v2078 = vpack.c.b16 %v2044, %v2043
      %v2079 = vpack.c.b16 %v2046, %v2045
      %v2080 = vpack.c.b16 %v2048, %v2047
      %2113 = vmatprep.subr.bf16.mxu0 0
      %2114 = vmatpush1.bf16.msra.mxu0 %v2056
      %2115 = vmatprep.subr.bf16.mxu0 0
      %2116 = vmatpush1.bf16.msra.mxu0 %v2055
      %2117 = vmatprep.subr.bf16.mxu0 0
      %2118 = vmatpush1.bf16.msra.mxu0 %v2054
      %2119 = vmatprep.subr.bf16.mxu0 0
      %2120 = vmatpush1.bf16.msra.mxu0 %v2053
      %2121 = vmatprep.subr.bf16.mxu0 0
      %2122 = vmatpush1.bf16.msra.mxu0 %v2052
      %2123 = vmatprep.subr.bf16.mxu0 0
      %2124 = vmatpush1.bf16.msra.mxu0 %v2051
      %2125 = vmatprep.subr.bf16.mxu0 0
      %2126 = vmatpush1.bf16.msra.mxu0 %v2050
      %2127 = vmatprep.subr.bf16.mxu0 0
      %2128 = vmatpush1.bf16.msra.mxu0 %v2049
      %2129 = vmatprep.subr.bf16.mxu0 0
      %2130 = vmatpush2.bf16.msra.mxu0 %v2064
      %2131 = vmatprep.subr.bf16.mxu0 0
      %2132 = vmatpush2.bf16.msra.mxu0 %v2063
      %2133 = vmatprep.subr.bf16.mxu0 0
      %2134 = vmatpush2.bf16.msra.mxu0 %v2062
      %2135 = vmatprep.subr.bf16.mxu0 0
      %2136 = vmatpush2.bf16.msra.mxu0 %v2061
      %2137 = vmatprep.subr.bf16.mxu0 0
      %2138 = vmatpush2.bf16.msra.mxu0 %v2060
      %2139 = vmatprep.subr.bf16.mxu0 0
      %2140 = vmatpush2.bf16.msra.mxu0 %v2059
      %2141 = vmatprep.subr.bf16.mxu0 0
      %2142 = vmatpush2.bf16.msra.mxu0 %v2058
      %2143 = vmatprep.subr.bf16.mxu0 0
      %2144 = vmatpush2.bf16.msra.mxu0 %v2057
      %2145 = vmatprep.mubr.bf16.mxu0 %v1890
      %2146 = vmatmul.mubr.bf16.gmra.mxu0 %v1889
      %v2147 = vpop.f32.mrf.mxu0
      %v2148 = vadd.f32 %v1839, %v2147
      %v2149 = vpop.f32.mrf.mxu0
      %v2150 = vpop.f32.mrf.mxu0
      %v2151 = vadd.f32 %v1839, %v2150
      %v2152 = vpop.f32.mrf.mxu0
      %2153 = vmatprep.mubr.bf16.mxu0 %v1894
      %2154 = vmatmul.mubr.bf16.gmra.mxu0 %v1893
      %v2155 = vpop.f32.mrf.mxu0
      %v2156 = vadd.f32 %v1839, %v2155
      %v2157 = vpop.f32.mrf.mxu0
      %v2158 = vpop.f32.mrf.mxu0
      %v2159 = vadd.f32 %v1839, %v2158
      %v2160 = vpop.f32.mrf.mxu0
      %2161 = vmatprep.mubr.bf16.mxu0 %v1898
      %2162 = vmatmul.mubr.bf16.gmra.mxu0 %v1897
      %v2163 = vpop.f32.mrf.mxu0
      %v2164 = vadd.f32 %v1839, %v2163
      %v2165 = vpop.f32.mrf.mxu0
      %v2166 = vpop.f32.mrf.mxu0
      %v2167 = vadd.f32 %v1839, %v2166
      %v2168 = vpop.f32.mrf.mxu0
      %2169 = vmatprep.mubr.bf16.mxu0 %v1902
      %2170 = vmatmul.mubr.bf16.gmra.mxu0 %v1901
      %v2171 = vpop.f32.mrf.mxu0
      %v2172 = vadd.f32 %v1839, %v2171
      %v2173 = vpop.f32.mrf.mxu0
      %v2174 = vpop.f32.mrf.mxu0
      %v2175 = vadd.f32 %v1839, %v2174
      %v2176 = vpop.f32.mrf.mxu0
      %2177 = vdwg.mxu0
      %2178 = vmatprep.subr.bf16.mxu0 0
      %2179 = vmatpush1.bf16.msra.mxu0 %v2072
      %2180 = vmatprep.subr.bf16.mxu0 0
      %2181 = vmatpush1.bf16.msra.mxu0 %v2071
      %2182 = vmatprep.subr.bf16.mxu0 0
      %2183 = vmatpush1.bf16.msra.mxu0 %v2070
      %2184 = vmatprep.subr.bf16.mxu0 0
      %2185 = vmatpush1.bf16.msra.mxu0 %v2069
      %2186 = vmatprep.subr.bf16.mxu0 0
      %2187 = vmatpush1.bf16.msra.mxu0 %v2068
      %2188 = vmatprep.subr.bf16.mxu0 0
      %2189 = vmatpush1.bf16.msra.mxu0 %v2067
      %2190 = vmatprep.subr.bf16.mxu0 0
      %2191 = vmatpush1.bf16.msra.mxu0 %v2066
      %2192 = vmatprep.subr.bf16.mxu0 0
      %2193 = vmatpush1.bf16.msra.mxu0 %v2065
      %2194 = vmatprep.subr.bf16.mxu0 0
      %2195 = vmatpush2.bf16.msra.mxu0 %v2080
      %2196 = vmatprep.subr.bf16.mxu0 0
      %2197 = vmatpush2.bf16.msra.mxu0 %v2079
      %2198 = vmatprep.subr.bf16.mxu0 0
      %2199 = vmatpush2.bf16.msra.mxu0 %v2078
      %2200 = vmatprep.subr.bf16.mxu0 0
      %2201 = vmatpush2.bf16.msra.mxu0 %v2077
      %2202 = vmatprep.subr.bf16.mxu0 0
      %2203 = vmatpush2.bf16.msra.mxu0 %v2076
      %2204 = vmatprep.subr.bf16.mxu0 0
      %2205 = vmatpush2.bf16.msra.mxu0 %v2075
      %2206 = vmatprep.subr.bf16.mxu0 0
      %2207 = vmatpush2.bf16.msra.mxu0 %v2074
      %2208 = vmatprep.subr.bf16.mxu0 0
      %2209 = vmatpush2.bf16.msra.mxu0 %v2073
      %2210 = vmatprep.mubr.bf16.mxu0 %v1892
      %2211 = vmatmul.mubr.bf16.gmra.mxu0 %v1891
      %v2212 = vpop.f32.mrf.mxu0
      %v2213 = vadd.f32 %v2148, %v2212
      %v2214 = vpop.f32.mrf.mxu0
      %v2215 = vpop.f32.mrf.mxu0
      %v2216 = vadd.f32 %v2151, %v2215
      %v2217 = vpop.f32.mrf.mxu0
      %2218 = vmatprep.mubr.bf16.mxu0 %v1896
      %2219 = vmatmul.mubr.bf16.gmra.mxu0 %v1895
      %v2220 = vpop.f32.mrf.mxu0
      %v2221 = vadd.f32 %v2156, %v2220
      %v2222 = vpop.f32.mrf.mxu0
      %v2223 = vpop.f32.mrf.mxu0
      %v2224 = vadd.f32 %v2159, %v2223
      %v2225 = vpop.f32.mrf.mxu0
      %2226 = vmatprep.mubr.bf16.mxu0 %v1900
      %2227 = vmatmul.mubr.bf16.gmra.mxu0 %v1899
      %v2228 = vpop.f32.mrf.mxu0
      %v2229 = vadd.f32 %v2164, %v2228
      %v2230 = vpop.f32.mrf.mxu0
      %v2231 = vpop.f32.mrf.mxu0
      %v2232 = vadd.f32 %v2167, %v2231
      %v2233 = vpop.f32.mrf.mxu0
      %2234 = vmatprep.mubr.bf16.mxu0 %v1904
      %2235 = vmatmul.mubr.bf16.gmra.mxu0 %v1903
      %v2236 = vpop.f32.mrf.mxu0
      %v2237 = vadd.f32 %v2172, %v2236
      %v2238 = vpop.f32.mrf.mxu0
      %v2239 = vpop.f32.mrf.mxu0
      %v2240 = vadd.f32 %v2175, %v2239
      %v2241 = vpop.f32.mrf.mxu0
      %2242 = vdwg.mxu0
      %v2243 = vld [vmem:[%s9] sm:$0xff]
      %v2244 = vld [vmem:[%s9 + $0x8] sm:$0xff]
      %v2245 = vld [vmem:[%s9 + $0x10] sm:$0xff]
      %v2246 = vld [vmem:[%s9 + $0x18] sm:$0xff]
      %v2247 = vld [vmem:[%s9 + $0x20] sm:$0xff]
      %v2248 = vld [vmem:[%s9 + $0x28] sm:$0xff]
      %v2249 = vld [vmem:[%s9 + $0x30] sm:$0xff]
      %v2250 = vld [vmem:[%s9 + $0x38] sm:$0xff]
      %v2251 = vld [vmem:[%s10] sm:$0xff]
      %v2252 = vld [vmem:[%s10 + $0x8] sm:$0xff]
      %v2253 = vld [vmem:[%s10 + $0x10] sm:$0xff]
      %v2254 = vld [vmem:[%s10 + $0x18] sm:$0xff]
      %v2255 = vld [vmem:[%s10 + $0x20] sm:$0xff]
      %v2256 = vld [vmem:[%s10 + $0x28] sm:$0xff]
      %v2257 = vld [vmem:[%s10 + $0x30] sm:$0xff]
      %v2258 = vld [vmem:[%s10 + $0x38] sm:$0xff]
      %vm2259 = vcmask 523264
      %v2261 = vsel %vm2259, %v1724, 0
      %v2264 = vsel %vm2259, %v1727, 0
      %v2267 = vsel %vm2259, %v1732, 0
      %v2270 = vsel %vm2259, %v1735, 0
      %v2273 = vsel %vm2259, %v1740, 0
      %v2276 = vsel %vm2259, %v1743, 0
      %v2279 = vsel %vm2259, %v1748, 0
      %v2282 = vsel %vm2259, %v1751, 0
      %2284 = vmatprep.subr.mxu0 0.0
      %2285 = vmatpush1.msra.mxu0 0.0
      %2286 = vmatprep.subr.mxu0 0.0
      %2287 = vmatpush1.msra.mxu0 0.0
      %2288 = vmatprep.subr.mxu0 0.0
      %2289 = vmatpush1.msra.mxu0 0.0
      %2290 = vmatprep.subr.mxu0 0.0
      %2291 = vmatpush1.msra.mxu0 0.0
      %2292 = vmatprep.subr.mxu0 0.0
      %2293 = vmatpush1.msra.mxu0 0.0
      %2294 = vmatprep.subr.mxu0 0.0
      %2295 = vmatpush1.msra.mxu0 0.0
      %2296 = vmatprep.subr.mxu0 0.0
      %2297 = vmatpush1.msra.mxu0 0.0
      %2298 = vmatprep.subr.mxu0 0.0
      %2299 = vmatpush1.msra.mxu0 0.0
      %2300 = vmatprep.subr.mxu0 0.0
      %2301 = vmatpush1.msra.mxu0 %v2258
      %2302 = vmatprep.subr.mxu0 0.0
      %2303 = vmatpush1.msra.mxu0 %v2257
      %2304 = vmatprep.subr.mxu0 0.0
      %2305 = vmatpush1.msra.mxu0 %v2256
      %2306 = vmatprep.subr.mxu0 0.0
      %2307 = vmatpush1.msra.mxu0 %v2255
      %2308 = vmatprep.subr.mxu0 0.0
      %2309 = vmatpush1.msra.mxu0 %v2254
      %2310 = vmatprep.subr.mxu0 0.0
      %2311 = vmatpush1.msra.mxu0 %v2253
      %2312 = vmatprep.subr.mxu0 0.0
      %2313 = vmatpush1.msra.mxu0 %v2252
      %2314 = vmatprep.subr.mxu0 0.0
      %2315 = vmatpush1.msra.mxu0 %v2251
      %2316 = vmatprep.subr.mxu0 0.0
      %2317 = vmatpush2.msra.mxu0 0.0
      %2318 = vmatprep.subr.mxu0 0.0
      %2319 = vmatpush2.msra.mxu0 0.0
      %2320 = vmatprep.subr.mxu0 0.0
      %2321 = vmatpush2.msra.mxu0 0.0
      %2322 = vmatprep.subr.mxu0 0.0
      %2323 = vmatpush2.msra.mxu0 0.0
      %2324 = vmatprep.subr.mxu0 0.0
      %2325 = vmatpush2.msra.mxu0 0.0
      %2326 = vmatprep.subr.mxu0 0.0
      %2327 = vmatpush2.msra.mxu0 0.0
      %2328 = vmatprep.subr.mxu0 0.0
      %2329 = vmatpush2.msra.mxu0 0.0
      %2330 = vmatprep.subr.mxu0 0.0
      %2331 = vmatpush2.msra.mxu0 0.0
      %2332 = vmatprep.subr.mxu0 0.0
      %2333 = vmatpush2.msra.mxu0 0.0
      %2334 = vmatprep.subr.mxu0 0.0
      %2335 = vmatpush2.msra.mxu0 0.0
      %2336 = vmatprep.subr.mxu0 0.0
      %2337 = vmatpush2.msra.mxu0 0.0
      %2338 = vmatprep.subr.mxu0 0.0
      %2339 = vmatpush2.msra.mxu0 0.0
      %2340 = vmatprep.subr.mxu0 0.0
      %2341 = vmatpush2.msra.mxu0 0.0
      %2342 = vmatprep.subr.mxu0 0.0
      %2343 = vmatpush2.msra.mxu0 0.0
      %2344 = vmatprep.subr.mxu0 0.0
      %2345 = vmatpush2.msra.mxu0 0.0
      %2346 = vmatprep.subr.mxu0 0.0
      %2347 = vmatpush2.msra.mxu0 0.0
      %2348 = vmatprep.mubr.f32.mxu0 0.0
      %2349 = vmatmul.mubr.f32.gmra.mxu0 %v2261
      %v2350 = vpop.f32.mrf.mxu0
      %v2351 = vadd.f32 0.0, %v2350
      %v2352 = vpop.f32.mrf.mxu0
      %2353 = vmatprep.mubr.f32.mxu0 0.0
      %2354 = vmatmul.mubr.f32.gmra.mxu0 %v2264
      %v2355 = vpop.f32.mrf.mxu0
      %v2356 = vadd.f32 0.0, %v2355
      %v2357 = vpop.f32.mrf.mxu0
      %2358 = vmatprep.mubr.f32.mxu0 0.0
      %2359 = vmatmul.mubr.f32.gmra.mxu0 %v2267
      %v2360 = vpop.f32.mrf.mxu0
      %v2361 = vadd.f32 0.0, %v2360
      %v2362 = vpop.f32.mrf.mxu0
      %2363 = vmatprep.mubr.f32.mxu0 0.0
      %2364 = vmatmul.mubr.f32.gmra.mxu0 %v2270
      %v2365 = vpop.f32.mrf.mxu0
      %v2366 = vadd.f32 0.0, %v2365
      %v2367 = vpop.f32.mrf.mxu0
      %2368 = vmatprep.mubr.f32.mxu0 0.0
      %2369 = vmatmul.mubr.f32.gmra.mxu0 %v2273
      %v2370 = vpop.f32.mrf.mxu0
      %v2371 = vadd.f32 0.0, %v2370
      %v2372 = vpop.f32.mrf.mxu0
      %2373 = vmatprep.mubr.f32.mxu0 0.0
      %2374 = vmatmul.mubr.f32.gmra.mxu0 %v2276
      %v2375 = vpop.f32.mrf.mxu0
      %v2376 = vadd.f32 0.0, %v2375
      %v2377 = vpop.f32.mrf.mxu0
      %2378 = vmatprep.mubr.f32.mxu0 0.0
      %2379 = vmatmul.mubr.f32.gmra.mxu0 %v2279
      %v2380 = vpop.f32.mrf.mxu0
      %v2381 = vadd.f32 0.0, %v2380
      %v2382 = vpop.f32.mrf.mxu0
      %2383 = vmatprep.mubr.f32.mxu0 0.0
      %2384 = vmatmul.mubr.f32.gmra.mxu0 %v2282
      %v2385 = vpop.f32.mrf.mxu0
      %v2386 = vadd.f32 0.0, %v2385
      %v2387 = vpop.f32.mrf.mxu0
      %2388 = vdwg.mxu0
      %v2390 = vsel %vm2259, %v753, 0
      %v2393 = vsel %vm2259, %v756, 0
      %v2396 = vsel %vm2259, %v761, 0
      %v2399 = vsel %vm2259, %v764, 0
      %v2402 = vsel %vm2259, %v769, 0
      %v2405 = vsel %vm2259, %v772, 0
      %v2408 = vsel %vm2259, %v777, 0
      %v2411 = vsel %vm2259, %v780, 0
      %2413 = vmatprep.subr.mxu0 0.0
      %2414 = vmatpush1.msra.mxu0 0.0
      %2415 = vmatprep.subr.mxu0 0.0
      %2416 = vmatpush1.msra.mxu0 0.0
      %2417 = vmatprep.subr.mxu0 0.0
      %2418 = vmatpush1.msra.mxu0 0.0
      %2419 = vmatprep.subr.mxu0 0.0
      %2420 = vmatpush1.msra.mxu0 0.0
      %2421 = vmatprep.subr.mxu0 0.0
      %2422 = vmatpush1.msra.mxu0 0.0
      %2423 = vmatprep.subr.mxu0 0.0
      %2424 = vmatpush1.msra.mxu0 0.0
      %2425 = vmatprep.subr.mxu0 0.0
      %2426 = vmatpush1.msra.mxu0 0.0
      %2427 = vmatprep.subr.mxu0 0.0
      %2428 = vmatpush1.msra.mxu0 0.0
      %2429 = vmatprep.subr.mxu0 0.0
      %2430 = vmatpush1.msra.mxu0 %v2250
      %2431 = vmatprep.subr.mxu0 0.0
      %2432 = vmatpush1.msra.mxu0 %v2249
      %2433 = vmatprep.subr.mxu0 0.0
      %2434 = vmatpush1.msra.mxu0 %v2248
      %2435 = vmatprep.subr.mxu0 0.0
      %2436 = vmatpush1.msra.mxu0 %v2247
      %2437 = vmatprep.subr.mxu0 0.0
      %2438 = vmatpush1.msra.mxu0 %v2246
      %2439 = vmatprep.subr.mxu0 0.0
      %2440 = vmatpush1.msra.mxu0 %v2245
      %2441 = vmatprep.subr.mxu0 0.0
      %2442 = vmatpush1.msra.mxu0 %v2244
      %2443 = vmatprep.subr.mxu0 0.0
      %2444 = vmatpush1.msra.mxu0 %v2243
      %2445 = vmatprep.subr.mxu0 0.0
      %2446 = vmatpush2.msra.mxu0 0.0
      %2447 = vmatprep.subr.mxu0 0.0
      %2448 = vmatpush2.msra.mxu0 0.0
      %2449 = vmatprep.subr.mxu0 0.0
      %2450 = vmatpush2.msra.mxu0 0.0
      %2451 = vmatprep.subr.mxu0 0.0
      %2452 = vmatpush2.msra.mxu0 0.0
      %2453 = vmatprep.subr.mxu0 0.0
      %2454 = vmatpush2.msra.mxu0 0.0
      %2455 = vmatprep.subr.mxu0 0.0
      %2456 = vmatpush2.msra.mxu0 0.0
      %2457 = vmatprep.subr.mxu0 0.0
      %2458 = vmatpush2.msra.mxu0 0.0
      %2459 = vmatprep.subr.mxu0 0.0
      %2460 = vmatpush2.msra.mxu0 0.0
      %2461 = vmatprep.subr.mxu0 0.0
      %2462 = vmatpush2.msra.mxu0 0.0
      %2463 = vmatprep.subr.mxu0 0.0
      %2464 = vmatpush2.msra.mxu0 0.0
      %2465 = vmatprep.subr.mxu0 0.0
      %2466 = vmatpush2.msra.mxu0 0.0
      %2467 = vmatprep.subr.mxu0 0.0
      %2468 = vmatpush2.msra.mxu0 0.0
      %2469 = vmatprep.subr.mxu0 0.0
      %2470 = vmatpush2.msra.mxu0 0.0
      %2471 = vmatprep.subr.mxu0 0.0
      %2472 = vmatpush2.msra.mxu0 0.0
      %2473 = vmatprep.subr.mxu0 0.0
      %2474 = vmatpush2.msra.mxu0 0.0
      %2475 = vmatprep.subr.mxu0 0.0
      %2476 = vmatpush2.msra.mxu0 0.0
      %2477 = vmatprep.mubr.f32.mxu0 0.0
      %2478 = vmatmul.mubr.f32.gmra.mxu0 %v2390
      %v2479 = vpop.f32.mrf.mxu0
      %v2480 = vadd.f32 %v2351, %v2479
      %v2481 = vpop.f32.mrf.mxu0
      %2482 = vmatprep.mubr.f32.mxu0 0.0
      %2483 = vmatmul.mubr.f32.gmra.mxu0 %v2393
      %v2484 = vpop.f32.mrf.mxu0
      %v2485 = vadd.f32 %v2356, %v2484
      %v2486 = vpop.f32.mrf.mxu0
      %2487 = vmatprep.mubr.f32.mxu0 0.0
      %2488 = vmatmul.mubr.f32.gmra.mxu0 %v2396
      %v2489 = vpop.f32.mrf.mxu0
      %v2490 = vadd.f32 %v2361, %v2489
      %v2491 = vpop.f32.mrf.mxu0
      %2492 = vmatprep.mubr.f32.mxu0 0.0
      %2493 = vmatmul.mubr.f32.gmra.mxu0 %v2399
      %v2494 = vpop.f32.mrf.mxu0
      %v2495 = vadd.f32 %v2366, %v2494
      %v2496 = vpop.f32.mrf.mxu0
      %2497 = vmatprep.mubr.f32.mxu0 0.0
      %2498 = vmatmul.mubr.f32.gmra.mxu0 %v2402
      %v2499 = vpop.f32.mrf.mxu0
      %v2500 = vadd.f32 %v2371, %v2499
      %v2501 = vpop.f32.mrf.mxu0
      %2502 = vmatprep.mubr.f32.mxu0 0.0
      %2503 = vmatmul.mubr.f32.gmra.mxu0 %v2405
      %v2504 = vpop.f32.mrf.mxu0
      %v2505 = vadd.f32 %v2376, %v2504
      %v2506 = vpop.f32.mrf.mxu0
      %2507 = vmatprep.mubr.f32.mxu0 0.0
      %2508 = vmatmul.mubr.f32.gmra.mxu0 %v2408
      %v2509 = vpop.f32.mrf.mxu0
      %v2510 = vadd.f32 %v2381, %v2509
      %v2511 = vpop.f32.mrf.mxu0
      %2512 = vmatprep.mubr.f32.mxu0 0.0
      %2513 = vmatmul.mubr.f32.gmra.mxu0 %v2411
      %v2514 = vpop.f32.mrf.mxu0
      %v2515 = vadd.f32 %v2386, %v2514
      %v2516 = vpop.f32.mrf.mxu0
      %2517 = vdwg.mxu0
      %v2518 = vld [vmem:[%s11] sm:$0xff]
      %v2519 = vld [vmem:[%s11 + $0x8] sm:$0xff]
      %v2520 = vld [vmem:[%s11 + $0x10] sm:$0xff]
      %v2521 = vld [vmem:[%s11 + $0x18] sm:$0xff]
      %v2522 = vld [vmem:[%s11 + $0x20] sm:$0xff]
      %v2523 = vld [vmem:[%s11 + $0x28] sm:$0xff]
      %v2524 = vld [vmem:[%s11 + $0x30] sm:$0xff]
      %v2525 = vld [vmem:[%s11 + $0x38] sm:$0xff]
      %v2527 = vsel %vm2259, %v2213, 0
      %v2530 = vsel %vm2259, %v2216, 0
      %v2533 = vsel %vm2259, %v2221, 0
      %v2536 = vsel %vm2259, %v2224, 0
      %v2539 = vsel %vm2259, %v2229, 0
      %v2542 = vsel %vm2259, %v2232, 0
      %v2545 = vsel %vm2259, %v2237, 0
      %v2548 = vsel %vm2259, %v2240, 0
      %2550 = vmatprep.subr.mxu0 0.0
      %2551 = vmatpush1.msra.mxu0 0.0
      %2552 = vmatprep.subr.mxu0 0.0
      %2553 = vmatpush1.msra.mxu0 0.0
      %2554 = vmatprep.subr.mxu0 0.0
      %2555 = vmatpush1.msra.mxu0 0.0
      %2556 = vmatprep.subr.mxu0 0.0
      %2557 = vmatpush1.msra.mxu0 0.0
      %2558 = vmatprep.subr.mxu0 0.0
      %2559 = vmatpush1.msra.mxu0 0.0
      %2560 = vmatprep.subr.mxu0 0.0
      %2561 = vmatpush1.msra.mxu0 0.0
      %2562 = vmatprep.subr.mxu0 0.0
      %2563 = vmatpush1.msra.mxu0 0.0
      %2564 = vmatprep.subr.mxu0 0.0
      %2565 = vmatpush1.msra.mxu0 0.0
      %2566 = vmatprep.subr.mxu0 0.0
      %2567 = vmatpush1.msra.mxu0 %v2525
      %2568 = vmatprep.subr.mxu0 0.0
      %2569 = vmatpush1.msra.mxu0 %v2524
      %2570 = vmatprep.subr.mxu0 0.0
      %2571 = vmatpush1.msra.mxu0 %v2523
      %2572 = vmatprep.subr.mxu0 0.0
      %2573 = vmatpush1.msra.mxu0 %v2522
      %2574 = vmatprep.subr.mxu0 0.0
      %2575 = vmatpush1.msra.mxu0 %v2521
      %2576 = vmatprep.subr.mxu0 0.0
      %2577 = vmatpush1.msra.mxu0 %v2520
      %2578 = vmatprep.subr.mxu0 0.0
      %2579 = vmatpush1.msra.mxu0 %v2519
      %2580 = vmatprep.subr.mxu0 0.0
      %2581 = vmatpush1.msra.mxu0 %v2518
      %2582 = vmatprep.subr.mxu0 0.0
      %2583 = vmatpush2.msra.mxu0 0.0
      %2584 = vmatprep.subr.mxu0 0.0
      %2585 = vmatpush2.msra.mxu0 0.0
      %2586 = vmatprep.subr.mxu0 0.0
      %2587 = vmatpush2.msra.mxu0 0.0
      %2588 = vmatprep.subr.mxu0 0.0
      %2589 = vmatpush2.msra.mxu0 0.0
      %2590 = vmatprep.subr.mxu0 0.0
      %2591 = vmatpush2.msra.mxu0 0.0
      %2592 = vmatprep.subr.mxu0 0.0
      %2593 = vmatpush2.msra.mxu0 0.0
      %2594 = vmatprep.subr.mxu0 0.0
      %2595 = vmatpush2.msra.mxu0 0.0
      %2596 = vmatprep.subr.mxu0 0.0
      %2597 = vmatpush2.msra.mxu0 0.0
      %2598 = vmatprep.subr.mxu0 0.0
      %2599 = vmatpush2.msra.mxu0 0.0
      %2600 = vmatprep.subr.mxu0 0.0
      %2601 = vmatpush2.msra.mxu0 0.0
      %2602 = vmatprep.subr.mxu0 0.0
      %2603 = vmatpush2.msra.mxu0 0.0
      %2604 = vmatprep.subr.mxu0 0.0
      %2605 = vmatpush2.msra.mxu0 0.0
      %2606 = vmatprep.subr.mxu0 0.0
      %2607 = vmatpush2.msra.mxu0 0.0
      %2608 = vmatprep.subr.mxu0 0.0
      %2609 = vmatpush2.msra.mxu0 0.0
      %2610 = vmatprep.subr.mxu0 0.0
      %2611 = vmatpush2.msra.mxu0 0.0
      %2612 = vmatprep.subr.mxu0 0.0
      %2613 = vmatpush2.msra.mxu0 0.0
      %2614 = vmatprep.mubr.f32.mxu0 0.0
      %2615 = vmatmul.mubr.f32.gmra.mxu0 %v2527
      %v2616 = vpop.f32.mrf.mxu0
      %v2617 = vadd.f32 0.0, %v2616
      %v2618 = vpop.f32.mrf.mxu0
      %2619 = vmatprep.mubr.f32.mxu0 0.0
      %2620 = vmatmul.mubr.f32.gmra.mxu0 %v2530
      %v2621 = vpop.f32.mrf.mxu0
      %v2622 = vadd.f32 0.0, %v2621
      %v2623 = vpop.f32.mrf.mxu0
      %2624 = vmatprep.mubr.f32.mxu0 0.0
      %2625 = vmatmul.mubr.f32.gmra.mxu0 %v2533
      %v2626 = vpop.f32.mrf.mxu0
      %v2627 = vadd.f32 0.0, %v2626
      %v2628 = vpop.f32.mrf.mxu0
      %2629 = vmatprep.mubr.f32.mxu0 0.0
      %2630 = vmatmul.mubr.f32.gmra.mxu0 %v2536
      %v2631 = vpop.f32.mrf.mxu0
      %v2632 = vadd.f32 0.0, %v2631
      %v2633 = vpop.f32.mrf.mxu0
      %2634 = vmatprep.mubr.f32.mxu0 0.0
      %2635 = vmatmul.mubr.f32.gmra.mxu0 %v2539
      %v2636 = vpop.f32.mrf.mxu0
      %v2637 = vadd.f32 0.0, %v2636
      %v2638 = vpop.f32.mrf.mxu0
      %2639 = vmatprep.mubr.f32.mxu0 0.0
      %2640 = vmatmul.mubr.f32.gmra.mxu0 %v2542
      %v2641 = vpop.f32.mrf.mxu0
      %v2642 = vadd.f32 0.0, %v2641
      %v2643 = vpop.f32.mrf.mxu0
      %2644 = vmatprep.mubr.f32.mxu0 0.0
      %2645 = vmatmul.mubr.f32.gmra.mxu0 %v2545
      %v2646 = vpop.f32.mrf.mxu0
      %v2647 = vadd.f32 0.0, %v2646
      %v2648 = vpop.f32.mrf.mxu0
      %2649 = vmatprep.mubr.f32.mxu0 0.0
      %2650 = vmatmul.mubr.f32.gmra.mxu0 %v2548
      %v2651 = vpop.f32.mrf.mxu0
      %v2652 = vadd.f32 0.0, %v2651
      %v2653 = vpop.f32.mrf.mxu0
      %2654 = vdwg.mxu0
      %v2655 = vadd.f32 %v2480, %v2617
      %v2656 = vadd.f32 %v2485, %v2622
      %v2657 = vadd.f32 %v2490, %v2627
      %v2658 = vadd.f32 %v2495, %v2632
      %v2659 = vadd.f32 %v2500, %v2637
      %v2660 = vadd.f32 %v2505, %v2642
      %v2661 = vadd.f32 %v2510, %v2647
      %v2662 = vadd.f32 %v2515, %v2652
      %v2663 = vld [vmem:[%s12] sm:$0x1]
      %v2665 = vlaneseq
      %v2666 = vshrl.u32 %v2665, 7
      %v2667 = vsub.s32 0, %v2666
      %v2668 = vrot.slane %v2663, %v2667
      %v2670 = vadd.f32 %v2655, %v2668
      %v2671 = vadd.f32 %v2656, %v2668
      %v2672 = vadd.f32 %v2657, %v2668
      %v2673 = vadd.f32 %v2658, %v2668
      %v2674 = vadd.f32 %v2659, %v2668
      %v2675 = vadd.f32 %v2660, %v2668
      %v2676 = vadd.f32 %v2661, %v2668
      %v2677 = vadd.f32 %v2662, %v2668
      %v2678 = vmax.f32 %v2670, 0.0
      %v2679 = vmax.f32 %v2671, 0.0
      %v2680 = vmax.f32 %v2672, 0.0
      %v2681 = vmax.f32 %v2673, 0.0
      %v2682 = vmax.f32 %v2674, 0.0
      %v2683 = vmax.f32 %v2675, 0.0
      %v2684 = vmax.f32 %v2676, 0.0
      %v2685 = vmax.f32 %v2677, 0.0
      %v2686 = vld [vmem:[%s13] sm:$0x1]
      %v2688 = vlaneseq
      %v2689 = vshrl.u32 %v2688, 7
      %v2690 = vsub.s32 0, %v2689
      %v2691 = vrot.slane %v2686, %v2690
      %v2693 = vmul.f32 %v2678, %v2691
      %v2694 = vmul.f32 %v2679, %v2691
      %v2695 = vmul.f32 %v2680, %v2691
      %v2696 = vmul.f32 %v2681, %v2691
      %v2697 = vmul.f32 %v2682, %v2691
      %v2698 = vmul.f32 %v2683, %v2691
      %v2699 = vmul.f32 %v2684, %v2691
      %v2700 = vmul.f32 %v2685, %v2691
      %v2701 = vsel %vm2259, %v2693, 0.0
      %2702 = vadd.xlane.f32.xlu0 %v2701
      %v2703 = vpop.xlane.xlu0 %2702
      %v2704 = vsel %vm2259, %v2694, 0.0
      %2705 = vadd.xlane.f32.xlu0 %v2704
      %v2706 = vpop.xlane.xlu0 %2705
      %v2707 = vsel %vm2259, %v2695, 0.0
      %2708 = vadd.xlane.f32.xlu0 %v2707
      %v2709 = vpop.xlane.xlu0 %2708
      %v2710 = vsel %vm2259, %v2696, 0.0
      %2711 = vadd.xlane.f32.xlu0 %v2710
      %v2712 = vpop.xlane.xlu0 %2711
      %v2713 = vsel %vm2259, %v2697, 0.0
      %2714 = vadd.xlane.f32.xlu0 %v2713
      %v2715 = vpop.xlane.xlu0 %2714
      %v2716 = vsel %vm2259, %v2698, 0.0
      %2717 = vadd.xlane.f32.xlu0 %v2716
      %v2718 = vpop.xlane.xlu0 %2717
      %v2719 = vsel %vm2259, %v2699, 0.0
      %2720 = vadd.xlane.f32.xlu0 %v2719
      %v2721 = vpop.xlane.xlu0 %2720
      %v2722 = vsel %vm2259, %v2700, 0.0
      %2723 = vadd.xlane.f32.xlu0 %v2722
      %v2724 = vpop.xlane.xlu0 %2723
      %v2725 = vld [vmem:[#allocation2] sm:$0x1]
      %v2727 = vlaneseq
      %v2728 = vshrl.u32 %v2727, 7
      %v2729 = vsub.s32 0, %v2728
      %v2730 = vrot.slane %v2725, %v2729
      %v2732 = vadd.f32 %v2703, %v2730
      %v2733 = vadd.f32 %v2706, %v2730
      %v2734 = vadd.f32 %v2709, %v2730
      %v2735 = vadd.f32 %v2712, %v2730
      %v2736 = vadd.f32 %v2715, %v2730
      %v2737 = vadd.f32 %v2718, %v2730
      %v2738 = vadd.f32 %v2721, %v2730
      %v2739 = vadd.f32 %v2724, %v2730
      %vm2740 = vcmask 7168
      %2741 = vst.msk [vmem:[%s612] sm:$0xff] %vm2740, %v2732
      %2742 = vst.msk [vmem:[%s612 + $0x8] sm:$0xff] %vm2740, %v2733
      %2743 = vst.msk [vmem:[%s612 + $0x10] sm:$0xff] %vm2740, %v2734
      %2744 = vst.msk [vmem:[%s612 + $0x18] sm:$0xff] %vm2740, %v2735
      %2745 = vst.msk [vmem:[%s612 + $0x20] sm:$0xff] %vm2740, %v2736
      %2746 = vst.msk [vmem:[%s612 + $0x28] sm:$0xff] %vm2740, %v2737
      %2747 = vst.msk [vmem:[%s612 + $0x30] sm:$0xff] %vm2740, %v2738
      %2748 = vst.msk [vmem:[%s612 + $0x38] sm:$0xff] %vm2740, %v2739
      %s2749 = smul.u32 8, %s33
      %p2750 = scmp.lt.s32.totalorder %s32, 1
      %s2751 = scalar_select %p2750, %s32, 1
      %p2752 = scmp.lt.s32.totalorder %s2749, 7
      %s2753 = scalar_select %p2752, %s2749, 7
      %s2754 = smul.addr %s2751, 8
      %s2755 = sadd.s32 %s2753, %s2754
      %s2756 = smul.addr %s2755, 8
      %s2757 = scalar_lea.vmem %s15, %s2756
      // Predicated region
      $region81: #{mask_head_forward.1} parent=79 // pred_check
        %p2758 = pneg %p396
      $region82: #{mask_head_forward.1} parent=79 // pred_check_branch
        %2760 = sbr.rel (%p2758) target = $region84
      $region83: #{mask_head_forward.1} parent=79 // pred_region
        %s2761 = smul.u32 8, %s33
      $region84: #{mask_head_forward.1} parent=79 // pred_fallthru
        _
    $region80: #{mask_head_forward.1} parent=5 // pred_fallthru
      _
    %p2762 = scmp.le.s32.totalorder 2, %s23
    // Predicated region
    $region85: #{mask_head_forward.1} parent=5 // pred_check
      %p2763 = pneg %p2762
    $region86: #{mask_head_forward.1} parent=5 // pred_check_branch
      %2765 = sbr.rel (%p2763) target = $region88
    $region87: #{mask_head_forward.1} parent=5 // pred_region
      %s2766 = ssub.s32 %s23, 2
      // Predicated region
      $region89: #{mask_head_forward.1} parent=87 // pred_check
        %p2767 = pneg %p402
      $region90: #{mask_head_forward.1} parent=87 // pred_check_branch
        %2769 = sbr.rel (%p2767) target = $region92
      $region91: #{mask_head_forward.1} parent=87 // pred_region
        %s2770 = smul.u32 8, %s35
        %p2771 = scmp.lt.s32.totalorder %s34, 1
        %s2772 = scalar_select %p2771, %s34, 1
        %p2773 = scmp.lt.s32.totalorder %s2770, 7
        %s2774 = scalar_select %p2773, %s2770, 7
        %s2775 = smul.addr %s2772, 8
        %s2776 = sadd.s32 %s2774, %s2775
        %s2777 = smul.addr %s2776, 8
        %s2778 = scalar_lea.vmem %s15, %s2777
      $region92: #{mask_head_forward.1} parent=87 // pred_fallthru
        _
    $region88: #{mask_head_forward.1} parent=5 // pred_fallthru
      _
  $region6: #{mask_head_forward.1} parent=0 // loop_footer
    %s27 = sadd.s32 1, %s23
  $region7: #{mask_head_forward.1} parent=0 // loop_footer_branch
    %22 = sbr.rel target = $region3
  $region8: #{mask_head_forward.1} parent=0 // loop_exit
    _

</llo_original>
